<compile_context>
chip_gen: v5e
topology: v5e:2x2
jax: 0.10.0
libtpu: 0.0.40
codegen_flags: <defaults>
</compile_context>

<pallas_src>
import math
from functools import partial

import jax
import jax.numpy as jnp
from jax.experimental import pallas as pl
from jax.experimental.pallas import tpu as pltpu


# ----------------------------- small helpers ---------------------------------

def _round_up(x, m):
    return ((x + m - 1) // m) * m


def _layernorm(x, gamma, beta, eps=1e-5):
    # torch.nn.LayerNorm: biased variance over last dim, eps=1e-5
    mean = jnp.mean(x, axis=-1, keepdims=True)
    var = jnp.mean((x - mean) ** 2, axis=-1, keepdims=True)
    return (x - mean) * jax.lax.rsqrt(var + eps) * gamma + beta


def _vmem_capacity_bytes():
    try:
        info = pltpu.get_tpu_info()
        cap = getattr(info, "vmem_capacity_bytes", None)
        if cap:
            return int(cap)
    except Exception:
        pass
    return None


def _vmem_limit_bytes():
    cap = _vmem_capacity_bytes()
    return cap * 3 // 4 if cap else None


def _pick_batch_block(B, T, D, melp, w_itemsize):
    """Largest batch block TB that fits the per-generation VMEM budget (64 MiB v7x,
    128 MiB v5e/v6e) and keeps the matmul M dimension (TB*T) at a sane size."""
    cap = _vmem_capacity_bytes() or (64 << 20)          # conservative if unknown
    budget = cap * 3 // 4
    W = _round_up(4 * D, 128)
    # resident first/last-layer projections (+pos) — double-buffer pessimistically
    fixed = 2 * (2 * melp * D + melp) * w_itemsize + 2 * T * D * 4
    # per-layer weights, double-buffered: wqkv(D,3D) + wop(D,D) + w1(D,4D) + w2(4D,D) + vecs
    per_layer_w = 2 * ((3 * D * D + D * D + 4 * D * D + 4 * D * D) * w_itemsize + 8 * W * 4)
    # per-sequence footprint: x/out blocks (buffered), resident activation, live f32
    # intermediates (qkv, h1, xn/ffn) and (T, T) score tiles.
    per_seq = 4 * T * melp * 4 + T * D * 4 + T * (3 * D + 4 * D + 2 * D) * 4 + 2 * T * T * 4
    avail = budget - fixed - per_layer_w
    tb = max(1, avail // per_seq)
    tb = int(min(tb, B, max(1, 1024 // T)))             # cap M = TB*T at ~1024 rows
    return tb


# ----------------------------- fused Pallas kernel ----------------------------

# row layout of the packed per-layer "small vectors" tensor (see prepare_params)
_LN1_G, _LN1_B, _BOP, _LN2_G, _LN2_B, _B2, _BQKV, _B1 = range(8)


def _fused_forward_kernel(x_ref, pos_ref, in_w_ref, vecs_ref,
                          wqkv_ref, wop_ref, w1_ref, w2_ref,
                          out_w_ref, out_b_ref,
                          o_ref,
                          act_ref,
                          *, n_head):
    layer = pl.program_id(1)
    cdt = wqkv_ref.dtype                       # MXU operand dtype (f32 or bf16)

    tb, T, melp = x_ref.shape
    D = pos_ref.shape[-1]
    Dh = D // n_head
    M = tb * T

    # ---- input projection + positional embedding (+ folded input bias): first layer only ----
    @pl.when(layer == 0)
    def _():
        x0 = x_ref[...].reshape(M, melp).astype(cdt)
        h0 = jnp.dot(x0, in_w_ref[...], preferred_element_type=jnp.float32)    # (M, D)
        h0 = h0.reshape(tb, T, D) + pos_ref[...]         # pos already holds pos_emb + in_b
        act_ref[...] = h0.reshape(M, D)

    x = act_ref[...]                           # (M, D) f32, resident across layers
    vecs = vecs_ref[0]                         # (8, W) f32: packed per-layer vectors

    ln1_g = vecs[_LN1_G:_LN1_G + 1, :D]
    ln1_b = vecs[_LN1_B:_LN1_B + 1, :D]
    bop   = vecs[_BOP:_BOP + 1, :D]
    ln2_g = vecs[_LN2_G:_LN2_G + 1, :D]
    ln2_b = vecs[_LN2_B:_LN2_B + 1, :D]
    b2    = vecs[_B2:_B2 + 1, :D]
    bqkv  = vecs[_BQKV:_BQKV + 1, :3 * D]
    b1    = vecs[_B1:_B1 + 1, :4 * D]

    # ---- attention sub-block (pre-LN, residual); NON-causal, matching the reference ----
    xn = _layernorm(x, ln1_g, ln1_b)
    # q rows of wqkv/bqkv were pre-scaled by 1/sqrt(Dh) host-side.
    qkv = jnp.dot(xn.astype(cdt), wqkv_ref[0],
                  preferred_element_type=jnp.float32) + bqkv                   # (M, 3D)
    qkv = qkv.reshape(tb, T, 3 * D)

    heads = []
    for h in range(n_head):                    # static unroll over (small) head count
        qh = qkv[:, :, h * Dh:(h + 1) * Dh].astype(cdt)                        # (tb, T, Dh)
        kh = qkv[:, :, D + h * Dh:D + (h + 1) * Dh].astype(cdt)
        vh = qkv[:, :, 2 * D + h * Dh:2 * D + (h + 1) * Dh].astype(cdt)
        s = jnp.einsum("bqd,bkd->bqk", qh, kh,
                       preferred_element_type=jnp.float32)                     # (tb, T, T)
        s = s - jnp.max(s, axis=-1, keepdims=True)
        p = jnp.exp(s)
        p = p * pl.reciprocal(jnp.sum(p, axis=-1, keepdims=True), approx=True)
        heads.append(jnp.einsum("bqk,bkd->bqd", p.astype(cdt), vh,
                                preferred_element_type=jnp.float32))           # (tb, T, Dh)
    ctx = jnp.concatenate(heads, axis=-1).reshape(M, D)
    # single folded out-projection: wop = (Wp @ Wo).T, bop = bo @ Wp.T + bp
    proj = jnp.dot(ctx.astype(cdt), wop_ref[0], preferred_element_type=jnp.float32) + bop
    x = x + proj                               # dropout == identity (eval)

    # ---- FFN sub-block (pre-LN, residual) ----
    xn = _layernorm(x, ln2_g, ln2_b)
    h1 = jnp.dot(xn.astype(cdt), w1_ref[0], preferred_element_type=jnp.float32) + b1
    h1 = jnp.maximum(h1, 0.0)
    ffn = jnp.dot(h1.astype(cdt), w2_ref[0], preferred_element_type=jnp.float32) + b2
    x = x + ffn
    act_ref[...] = x

    # ---- output projection + ReLU: last layer only ----
    @pl.when(layer == pl.num_programs(1) - 1)
    def _():
        y = jnp.dot(x.astype(cdt), out_w_ref[...],
                    preferred_element_type=jnp.float32) + out_b_ref[...]
        o_ref[...] = jnp.maximum(y, 0.0).reshape(tb, T, melp).astype(o_ref.dtype)


# ----------------------------- wrapper ----------------------------------------

def transformer_mel_forward(x, fp, n_head, batch_block=None):
    """x: (B, T, mel). fp: dict from prepare_params(). Returns (B, T, mel)."""
    B, T, mel = x.shape
    melp, D = fp["in_w"].shape
    L = fp["wqkv"].shape[0]

    if batch_block is None:
        batch_block = _pick_batch_block(B, T, D, melp, jnp.dtype(fp["wqkv"].dtype).itemsize)
    tb = int(batch_block)
    Bp = _round_up(B, tb)

    if melp != mel:
        x = jnp.pad(x, ((0, 0), (0, 0), (0, melp - mel)))   # exact: padded weight rows are zero
    if Bp != B:
        x = jnp.pad(x, ((0, Bp - B), (0, 0), (0, 0)))       # pad batch; sliced off below
    pos = fp["pos"][:T]                                     # (T, D): pos emb + folded input bias

    def per_layer_spec(a):
        return pl.BlockSpec((1,) + a.shape[1:], lambda b, l: (l, 0, 0))

    def const_spec(a):
        nd = a.ndim
        return pl.BlockSpec(a.shape, lambda b, l, _nd=nd: (0,) * _nd)

    # NOTE(v7x): in_w/out_w/out_b are only touched at the first/last layer; if VMEM binds,
    # they could move to memory_space=pl.ANY and be DMA'd under pl.when — kept simple here.
    in_specs = [
        pl.BlockSpec((tb, T, melp), lambda b, l: (b, 0, 0)),  # x (constant along layer axis)
        const_spec(pos),
        const_spec(fp["in_w"]),
        per_layer_spec(fp["vecs"]),
        per_layer_spec(fp["wqkv"]), per_layer_spec(fp["wop"]),
        per_layer_spec(fp["w1"]), per_layer_spec(fp["w2"]),
        const_spec(fp["out_w"]), const_spec(fp["out_b"]),
    ]

    out = pl.pallas_call(
        partial(_fused_forward_kernel, n_head=n_head),
        out_shape=jax.ShapeDtypeStruct((Bp, T, melp), x.dtype),
        grid=(Bp // tb, L),
        in_specs=in_specs,
        out_specs=pl.BlockSpec((tb, T, melp), lambda b, l: (b, 0, 0)),
        scratch_shapes=[pltpu.VMEM((tb * T, D), jnp.float32)],     # resident activation
        compiler_params=pltpu.CompilerParams(
            # batch blocks independent (megacore sharding where supported; on v7x consider
            # pltpu.CORE_PARALLEL if one TensorCore idles), layers strictly sequential.
            dimension_semantics=("parallel", "arbitrary"),
            vmem_limit_bytes=_vmem_limit_bytes()),
    )(x, pos, fp["in_w"], fp["vecs"],
      fp["wqkv"], fp["wop"], fp["w1"], fp["w2"],
      fp["out_w"], fp["out_b"])

    out = out[:B] if Bp != B else out
    return out[..., :mel] if melp != mel else out


# ----------------------------- host-side param prep ---------------------------

def prepare_params(params, n_head, compute_dtype=jnp.bfloat16):
    """Pre-transpose to (in, out), fold Wo/Wp, the softmax scale, and in_b->pos; pack the 8
    small per-layer vectors into one lane-padded tensor; pad mel lane dim to a 128 multiple."""
    D, mel = params["in_w"].shape
    assert D % n_head == 0, "d_model must be divisible by n_head"
    Dh = D // n_head
    scale = 1.0 / math.sqrt(Dh)
    melp = _round_up(mel, 128)
    W = _round_up(4 * D, 128)
    f32, cdt = jnp.float32, compute_dtype

    in_w_t = jnp.zeros((melp, D), f32).at[:mel, :].set(params["in_w"].T)
    out_w_t = jnp.zeros((D, melp), f32).at[:, :mel].set(params["out_w"].T)
    out_b = jnp.zeros((1, melp), f32).at[0, :mel].set(params["out_b"])
    pos_pb = params["pos"] + params["in_b"]                  # fold input bias into pos table

    def stack(fn):
        return jnp.stack([fn(b) for b in params["blocks"]])

    def wqkv_t(b):                     # fold 1/sqrt(Dh) into the q rows, then transpose
        return b["wqkv"].at[:D, :].multiply(scale).T         # (D, 3D)

    def wop_t(b):                      # fold out_proj and block.proj (exact in eval mode)
        return (b["wp"] @ b["wo"]).T                         # (D, D), (in, out)

    def vecs(b):                       # 8 small per-layer vectors -> one (8, W) tile
        v = jnp.zeros((8, W), f32)
        v = v.at[_LN1_G, :D].set(b["ln1_g"])
        v = v.at[_LN1_B, :D].set(b["ln1_b"])
        v = v.at[_BOP, :D].set(b["bo"] @ b["wp"].T + b["bp"])
        v = v.at[_LN2_G, :D].set(b["ln2_g"])
        v = v.at[_LN2_B, :D].set(b["ln2_b"])
        v = v.at[_B2, :D].set(b["b2"])
        v = v.at[_BQKV, :3 * D].set(b["bqkv"].at[:D].multiply(scale))
        v = v.at[_B1, :4 * D].set(b["b1"])
        return v

    return {
        "in_w": in_w_t.astype(cdt),
        "pos": pos_pb.astype(f32),
        "vecs": stack(vecs).astype(f32),
        "wqkv": stack(wqkv_t).astype(cdt),
        "wop": stack(wop_t).astype(cdt),
        "w1": stack(lambda b: b["w1"].T).astype(cdt),
        "w2": stack(lambda b: b["w2"].T).astype(cdt),
        "out_w": out_w_t.astype(cdt),
        "out_b": out_b,
    }


# ----------------------------- raw (torch-layout) param init ------------------

def init_params(key, mel_bins, d_model, seq_length, n_head, num_layers):
    keys = iter(jax.random.split(key, 16 + 16 * num_layers))
    u = lambda shape, s=0.1: jax.random.uniform(next(keys), shape, jnp.float32, -s, s)
    params = {
        "in_w": u((d_model, mel_bins)),
        "in_b": u((d_model,), 0.05),
        "pos": u((seq_length, d_model)),
        "out_w": u((mel_bins, d_model)),
        "out_b": u((mel_bins,), 0.05),
        "blocks": [],
    }
    ff = 4 * d_model
    for _ in range(num_layers):
        params["blocks"].append({
            "ln1_g": 1.0 + u((d_model,), 0.05), "ln1_b": u((d_model,), 0.05),
            "wqkv": u((3 * d_model, d_model)), "bqkv": u((3 * d_model,), 0.05),
            "wo": u((d_model, d_model)), "bo": u((d_model,), 0.05),
            "wp": u((d_model, d_model)), "bp": u((d_model,), 0.05),
            "ln2_g": 1.0 + u((d_model,), 0.05), "ln2_b": u((d_model,), 0.05),
            "w1": u((ff, d_model)), "b1": u((ff,), 0.05),
            "w2": u((d_model, ff)), "b2": u((d_model,), 0.05),
        })
    return params


# ----------------------------- pure-JAX reference (torch semantics) -----------

def _reference_forward(x, params, n_head):
    D = params["in_w"].shape[0]
    Dh = D // n_head
    B, T, _ = x.shape
    h = x @ params["in_w"].T + params["in_b"] + params["pos"][:T]
    for p in params["blocks"]:
        xn = _layernorm(h, p["ln1_g"], p["ln1_b"])
        qkv = xn @ p["wqkv"].T + p["bqkv"]
        q, k, v = qkv[..., :D], qkv[..., D:2 * D], qkv[..., 2 * D:]
        heads = lambda t: t.reshape(B, T, n_head, Dh).transpose(0, 2, 1, 3)
        qh, kh, vh = heads(q), heads(k), heads(v)
        s = jnp.einsum("bhqd,bhkd->bhqk", qh, kh) / math.sqrt(Dh)
        a = jax.nn.softmax(s, axis=-1)
        o = jnp.einsum("bhqk,bhkd->bhqd", a, vh).transpose(0, 2, 1, 3).reshape(B, T, D)
        attn = o @ p["wo"].T + p["bo"]
        h = h + (attn @ p["wp"].T + p["bp"])
        xn = _layernorm(h, p["ln2_g"], p["ln2_b"])
        h = h + (jnp.maximum(xn @ p["w1"].T + p["b1"], 0.0) @ p["w2"].T + p["b2"])
    return jnp.maximum(h @ params["out_w"].T + params["out_b"], 0.0)


# ----------------------------- demo -------------------------------------------

if __name__ == "__main__":
    mel_bins = 32
    d_model = 32
    seq_length = 16
    n_head = 2
    num_layers = 2
    batch = 2

    key = jax.random.PRNGKey(0)
    k_x, k_p = jax.random.split(key)
    raw_params = init_params(k_p, mel_bins, d_model, seq_length, n_head, num_layers)
    x = jax.random.normal(k_x, (batch, seq_length, mel_bins), jnp.float32)

    fwd = jax.jit(transformer_mel_forward, static_argnums=2)

    with jax.default_matmul_precision("highest"):
        ref = _reference_forward(x, raw_params, n_head)

    # f32 weights: tight check against the PyTorch-semantics reference.
    params_f32 = prepare_params(raw_params, n_head=n_head, compute_dtype=jnp.float32)
    out_f32 = jax.block_until_ready(fwd(x, params_f32, n_head))
    assert out_f32.shape == (batch, seq_length, mel_bins)
    assert bool(jnp.all(out_f32 >= 0.0))  # final ReLU
    assert bool(jnp.allclose(out_f32, ref, atol=2e-2, rtol=2e-2)), \
        float(jnp.max(jnp.abs(out_f32 - ref)))

    # bf16 weights (the default): half the weight HBM/VMEM traffic, native MXU rate on v6e/v7x;
    # LayerNorm / softmax / accumulation stay f32 inside the kernel.
    params_bf16 = prepare_params(raw_params, n_head=n_head)
    out_bf16 = jax.block_until_ready(fwd(x, params_bf16, n_head))
    assert out_bf16.shape == (batch, seq_length, mel_bins)
    assert bool(jnp.allclose(out_bf16, ref, atol=1e-1, rtol=1e-1)), \
        float(jnp.max(jnp.abs(out_bf16 - ref)))

    print("KERNEL_OK")
</pallas_src>

<mosaic_0001>
module attributes {stable_mosaic.version = 11 : i64} {
  func.func @_fused_forward_kernel(%arg0: i32, %arg1: i32, %arg2: memref<2x16x128xf32, #tpu.memory_space<vmem>>, %arg3: memref<16x32xf32, #tpu.memory_space<vmem>>, %arg4: memref<128x32xf32, #tpu.memory_space<vmem>>, %arg5: memref<1x8x128xf32, #tpu.memory_space<vmem>>, %arg6: memref<1x32x96xf32, #tpu.memory_space<vmem>>, %arg7: memref<1x32x32xf32, #tpu.memory_space<vmem>>, %arg8: memref<1x32x128xf32, #tpu.memory_space<vmem>>, %arg9: memref<1x128x32xf32, #tpu.memory_space<vmem>>, %arg10: memref<32x128xf32, #tpu.memory_space<vmem>>, %arg11: memref<1x128xf32, #tpu.memory_space<vmem>>, %arg12: memref<2x16x128xf32, #tpu.memory_space<vmem>>, %arg13: memref<32x32xf32, #tpu.memory_space<vmem>>) attributes {dimension_semantics = [#tpu.dimension_semantics<parallel>, #tpu.dimension_semantics<arbitrary>], iteration_bounds = array<i64: 1, 2>, scalar_prefetch = 0 : i64, scratch_operands = 1 : i64, tpu.core_type = #tpu.core_type<tc>, window_params = [{transform_indices = @transform_0, window_bounds = array<i64: 2, 16, 128>}, {pipeline_mode = #tpu.pipeline_mode<synchronous>, transform_indices = @transform_1, window_bounds = array<i64: 16, 32>}, {pipeline_mode = #tpu.pipeline_mode<synchronous>, transform_indices = @transform_2, window_bounds = array<i64: 128, 32>}, {transform_indices = @transform_3, window_bounds = array<i64: 1, 8, 128>}, {transform_indices = @transform_4, window_bounds = array<i64: 1, 32, 96>}, {transform_indices = @transform_5, window_bounds = array<i64: 1, 32, 32>}, {transform_indices = @transform_6, window_bounds = array<i64: 1, 32, 128>}, {transform_indices = @transform_7, window_bounds = array<i64: 1, 128, 32>}, {pipeline_mode = #tpu.pipeline_mode<synchronous>, transform_indices = @transform_8, window_bounds = array<i64: 32, 128>}, {pipeline_mode = #tpu.pipeline_mode<synchronous>, transform_indices = @transform_9, window_bounds = array<i64: 1, 128>}, {transform_indices = @transform_10, window_bounds = array<i64: 2, 16, 128>}]} {
    %c0_i32 = arith.constant 0 : i32
    %0 = arith.cmpi eq, %arg1, %c0_i32 : i32
    %1 = arith.extui %0 : i1 to i32
    %c0_i32_0 = arith.constant 0 : i32
    %2 = arith.cmpi ne, %1, %c0_i32_0 : i32
    scf.if %2 {
      %c0_42 = arith.constant 0 : index
      %c0_43 = arith.constant 0 : index
      %c0_44 = arith.constant 0 : index
      %119 = vector.load %arg2[%c0_42, %c0_43, %c0_44] : memref<2x16x128xf32, #tpu.memory_space<vmem>>, vector<2x16x128xf32>
      %120 = vector.shape_cast %119 : vector<2x16x128xf32> to vector<32x128xf32>
      %c0_45 = arith.constant 0 : index
      %c0_46 = arith.constant 0 : index
      %121 = vector.load %arg4[%c0_45, %c0_46] : memref<128x32xf32, #tpu.memory_space<vmem>>, vector<128x32xf32>
      %cst_47 = arith.constant dense<0.000000e+00> : vector<32x32xf32>
      %122 = tpu.matmul %120, %121, %cst_47 {dimension_numbers = #tpu.dot_dimension_numbers<[1], [0], [0], [1], [0, 0, 1, 1], [], []>} : vector<32x128xf32>, vector<128x32xf32>, vector<32x32xf32> -> vector<32x32xf32>
      %123 = vector.shape_cast %122 : vector<32x32xf32> to vector<2x16x32xf32>
      %c0_48 = arith.constant 0 : index
      %c0_49 = arith.constant 0 : index
      %124 = vector.load %arg3[%c0_48, %c0_49] : memref<16x32xf32, #tpu.memory_space<vmem>>, vector<16x32xf32>
      %125 = vector.shape_cast %124 : vector<16x32xf32> to vector<1x16x32xf32>
      %126 = vector.broadcast %125 : vector<1x16x32xf32> to vector<2x16x32xf32>
      %127 = arith.addf %123, %126 : vector<2x16x32xf32>
      %128 = vector.shape_cast %127 : vector<2x16x32xf32> to vector<32x32xf32>
      %c0_50 = arith.constant 0 : index
      %c0_51 = arith.constant 0 : index
      %129 = vector.load %arg13[%c0_50, %c0_51] : memref<32x32xf32, #tpu.memory_space<vmem>>, vector<32x32xf32>
      tpu.vector_store %arg13[%c0_50, %c0_51], %128 {strides = array<i32>} : memref<32x32xf32, #tpu.memory_space<vmem>>, vector<32x32xf32>,
    } else {
    }
    %c0 = arith.constant 0 : index
    %c0_1 = arith.constant 0 : index
    %3 = vector.load %arg13[%c0, %c0_1] : memref<32x32xf32, #tpu.memory_space<vmem>>, vector<32x32xf32>
    %c0_2 = arith.constant 0 : index
    %c0_3 = arith.constant 0 : index
    %c0_4 = arith.constant 0 : index
    %4 = vector.load %arg5[%c0_2, %c0_3, %c0_4] : memref<1x8x128xf32, #tpu.memory_space<vmem>>, vector<1x8x128xf32>
    %5 = vector.shape_cast %4 : vector<1x8x128xf32> to vector<8x128xf32>
    %6 = vector.extract_strided_slice %5 {offsets = [0, 0], sizes = [1, 32], strides = [1, 1]} : vector<8x128xf32> to vector<1x32xf32>
    %7 = vector.extract_strided_slice %5 {offsets = [1, 0], sizes = [1, 32], strides = [1, 1]} : vector<8x128xf32> to vector<1x32xf32>
    %8 = vector.extract_strided_slice %5 {offsets = [2, 0], sizes = [1, 32], strides = [1, 1]} : vector<8x128xf32> to vector<1x32xf32>
    %9 = vector.extract_strided_slice %5 {offsets = [3, 0], sizes = [1, 32], strides = [1, 1]} : vector<8x128xf32> to vector<1x32xf32>
    %10 = vector.extract_strided_slice %5 {offsets = [4, 0], sizes = [1, 32], strides = [1, 1]} : vector<8x128xf32> to vector<1x32xf32>
    %11 = vector.extract_strided_slice %5 {offsets = [5, 0], sizes = [1, 32], strides = [1, 1]} : vector<8x128xf32> to vector<1x32xf32>
    %12 = vector.extract_strided_slice %5 {offsets = [6, 0], sizes = [1, 96], strides = [1, 1]} : vector<8x128xf32> to vector<1x96xf32>
    %13 = vector.extract_strided_slice %5 {offsets = [7, 0], sizes = [1, 128], strides = [1, 1]} : vector<8x128xf32> to vector<1x128xf32>
    %cst = arith.constant dense<0.000000e+00> : vector<32xf32>
    %14 = vector.multi_reduction <add>, %3, %cst [1] : vector<32x32xf32> to vector<32xf32>
    %15 = vector.shape_cast %14 : vector<32xf32> to vector<32x1xf32>
    %cst_5 = arith.constant 3.200000e+01 : f32
    %16 = vector.broadcast %cst_5 : f32 to vector<32x1xf32>
    %17 = arith.divf %15, %16 : vector<32x1xf32>
    %18 = vector.broadcast %17 : vector<32x1xf32> to vector<32x32xf32>
    %19 = arith.subf %3, %18 : vector<32x32xf32>
    %20 = arith.mulf %19, %19 : vector<32x32xf32>
    %cst_6 = arith.constant dense<0.000000e+00> : vector<32xf32>
    %21 = vector.multi_reduction <add>, %20, %cst_6 [1] : vector<32x32xf32> to vector<32xf32>
    %22 = vector.shape_cast %21 : vector<32xf32> to vector<32x1xf32>
    %cst_7 = arith.constant 3.200000e+01 : f32
    %23 = vector.broadcast %cst_7 : f32 to vector<32x1xf32>
    %24 = arith.divf %22, %23 : vector<32x1xf32>
    %25 = vector.broadcast %17 : vector<32x1xf32> to vector<32x32xf32>
    %26 = arith.subf %3, %25 : vector<32x32xf32>
    %cst_8 = arith.constant 9.99999974E-6 : f32
    %27 = vector.broadcast %cst_8 : f32 to vector<32x1xf32>
    %28 = arith.addf %24, %27 : vector<32x1xf32>
    %29 = math.rsqrt %28 : vector<32x1xf32>
    %30 = vector.broadcast %29 : vector<32x1xf32> to vector<32x32xf32>
    %31 = arith.mulf %26, %30 : vector<32x32xf32>
    %32 = vector.broadcast %6 : vector<1x32xf32> to vector<32x32xf32>
    %33 = arith.mulf %31, %32 : vector<32x32xf32>
    %34 = vector.broadcast %7 : vector<1x32xf32> to vector<32x32xf32>
    %35 = arith.addf %33, %34 : vector<32x32xf32>
    %c0_9 = arith.constant 0 : index
    %c0_10 = arith.constant 0 : index
    %c0_11 = arith.constant 0 : index
    %36 = vector.load %arg6[%c0_9, %c0_10, %c0_11] : memref<1x32x96xf32, #tpu.memory_space<vmem>>, vector<1x32x96xf32>
    %37 = vector.shape_cast %36 : vector<1x32x96xf32> to vector<32x96xf32>
    %cst_12 = arith.constant dense<0.000000e+00> : vector<32x96xf32>
    %38 = tpu.matmul %35, %37, %cst_12 {dimension_numbers = #tpu.dot_dimension_numbers<[1], [0], [0], [1], [0, 0, 1, 1], [], []>} : vector<32x32xf32>, vector<32x96xf32>, vector<32x96xf32> -> vector<32x96xf32>
    %39 = vector.broadcast %12 : vector<1x96xf32> to vector<32x96xf32>
    %40 = arith.addf %38, %39 : vector<32x96xf32>
    %41 = vector.shape_cast %40 : vector<32x96xf32> to vector<2x16x96xf32>
    %42 = vector.extract_strided_slice %41 {offsets = [0, 0, 0], sizes = [2, 16, 16], strides = [1, 1, 1]} : vector<2x16x96xf32> to vector<2x16x16xf32>
    %43 = vector.extract_strided_slice %41 {offsets = [0, 0, 32], sizes = [2, 16, 16], strides = [1, 1, 1]} : vector<2x16x96xf32> to vector<2x16x16xf32>
    %44 = vector.extract_strided_slice %41 {offsets = [0, 0, 64], sizes = [2, 16, 16], strides = [1, 1, 1]} : vector<2x16x96xf32> to vector<2x16x16xf32>
    "tpu.trace_start"() <{level = 10 : i32, message = "bqd,bkd->bqk"}> : () -> ()
    %cst_13 = arith.constant dense<0.000000e+00> : vector<2x16x16xf32>
    %45 = tpu.matmul %42, %43, %cst_13 {dimension_numbers = #tpu.dot_dimension_numbers<[2], [2], [1], [1], [0, 0, 0, 1, 1, 1], [0], [0]>} : vector<2x16x16xf32>, vector<2x16x16xf32>, vector<2x16x16xf32> -> vector<2x16x16xf32>
    "tpu.trace_stop"() : () -> ()
    %cst_14 = arith.constant dense<0xFF800000> : vector<2x16xf32>
    %46 = vector.multi_reduction <maximumf>, %45, %cst_14 [2] : vector<2x16x16xf32> to vector<2x16xf32>
    %47 = vector.shape_cast %46 : vector<2x16xf32> to vector<2x16x1xf32>
    %48 = vector.broadcast %47 : vector<2x16x1xf32> to vector<2x16x16xf32>
    %49 = arith.subf %45, %48 : vector<2x16x16xf32>
    %50 = math.exp %49 : vector<2x16x16xf32>
    %cst_15 = arith.constant dense<0.000000e+00> : vector<2x16xf32>
    %51 = vector.multi_reduction <add>, %50, %cst_15 [2] : vector<2x16x16xf32> to vector<2x16xf32>
    %52 = vector.shape_cast %51 : vector<2x16xf32> to vector<2x16x1xf32>
    %53 = tpu.reciprocal %52 {approx = true} : vector<2x16x1xf32> -> vector<2x16x1xf32>
    %54 = vector.broadcast %53 : vector<2x16x1xf32> to vector<2x16x16xf32>
    %55 = arith.mulf %50, %54 : vector<2x16x16xf32>
    "tpu.trace_start"() <{level = 10 : i32, message = "bqk,bkd->bqd"}> : () -> ()
    %cst_16 = arith.constant dense<0.000000e+00> : vector<2x16x16xf32>
    %56 = tpu.matmul %55, %44, %cst_16 {dimension_numbers = #tpu.dot_dimension_numbers<[2], [1], [1], [2], [0, 0, 0, 1, 1, 2], [0], [0]>} : vector<2x16x16xf32>, vector<2x16x16xf32>, vector<2x16x16xf32> -> vector<2x16x16xf32>
    "tpu.trace_stop"() : () -> ()
    %57 = vector.extract_strided_slice %41 {offsets = [0, 0, 16], sizes = [2, 16, 16], strides = [1, 1, 1]} : vector<2x16x96xf32> to vector<2x16x16xf32>
    %58 = vector.extract_strided_slice %41 {offsets = [0, 0, 48], sizes = [2, 16, 16], strides = [1, 1, 1]} : vector<2x16x96xf32> to vector<2x16x16xf32>
    %59 = vector.extract_strided_slice %41 {offsets = [0, 0, 80], sizes = [2, 16, 16], strides = [1, 1, 1]} : vector<2x16x96xf32> to vector<2x16x16xf32>
    "tpu.trace_start"() <{level = 10 : i32, message = "bqd,bkd->bqk"}> : () -> ()
    %cst_17 = arith.constant dense<0.000000e+00> : vector<2x16x16xf32>
    %60 = tpu.matmul %57, %58, %cst_17 {dimension_numbers = #tpu.dot_dimension_numbers<[2], [2], [1], [1], [0, 0, 0, 1, 1, 1], [0], [0]>} : vector<2x16x16xf32>, vector<2x16x16xf32>, vector<2x16x16xf32> -> vector<2x16x16xf32>
    "tpu.trace_stop"() : () -> ()
    %cst_18 = arith.constant dense<0xFF800000> : vector<2x16xf32>
    %61 = vector.multi_reduction <maximumf>, %60, %cst_18 [2] : vector<2x16x16xf32> to vector<2x16xf32>
    %62 = vector.shape_cast %61 : vector<2x16xf32> to vector<2x16x1xf32>
    %63 = vector.broadcast %62 : vector<2x16x1xf32> to vector<2x16x16xf32>
    %64 = arith.subf %60, %63 : vector<2x16x16xf32>
    %65 = math.exp %64 : vector<2x16x16xf32>
    %cst_19 = arith.constant dense<0.000000e+00> : vector<2x16xf32>
    %66 = vector.multi_reduction <add>, %65, %cst_19 [2] : vector<2x16x16xf32> to vector<2x16xf32>
    %67 = vector.shape_cast %66 : vector<2x16xf32> to vector<2x16x1xf32>
    %68 = tpu.reciprocal %67 {approx = true} : vector<2x16x1xf32> -> vector<2x16x1xf32>
    %69 = vector.broadcast %68 : vector<2x16x1xf32> to vector<2x16x16xf32>
    %70 = arith.mulf %65, %69 : vector<2x16x16xf32>
    "tpu.trace_start"() <{level = 10 : i32, message = "bqk,bkd->bqd"}> : () -> ()
    %cst_20 = arith.constant dense<0.000000e+00> : vector<2x16x16xf32>
    %71 = tpu.matmul %70, %59, %cst_20 {dimension_numbers = #tpu.dot_dimension_numbers<[2], [1], [1], [2], [0, 0, 0, 1, 1, 2], [0], [0]>} : vector<2x16x16xf32>, vector<2x16x16xf32>, vector<2x16x16xf32> -> vector<2x16x16xf32>
    "tpu.trace_stop"() : () -> ()
    %72 = tpu.concatenate %56, %71 in 2 : vector<2x16x16xf32>, vector<2x16x16xf32> -> vector<2x16x32xf32>
    %73 = vector.shape_cast %72 : vector<2x16x32xf32> to vector<32x32xf32>
    %c0_21 = arith.constant 0 : index
    %c0_22 = arith.constant 0 : index
    %c0_23 = arith.constant 0 : index
    %74 = vector.load %arg7[%c0_21, %c0_22, %c0_23] : memref<1x32x32xf32, #tpu.memory_space<vmem>>, vector<1x32x32xf32>
    %75 = vector.shape_cast %74 : vector<1x32x32xf32> to vector<32x32xf32>
    %cst_24 = arith.constant dense<0.000000e+00> : vector<32x32xf32>
    %76 = tpu.matmul %73, %75, %cst_24 {dimension_numbers = #tpu.dot_dimension_numbers<[1], [0], [0], [1], [0, 0, 1, 1], [], []>} : vector<32x32xf32>, vector<32x32xf32>, vector<32x32xf32> -> vector<32x32xf32>
    %77 = vector.broadcast %8 : vector<1x32xf32> to vector<32x32xf32>
    %78 = arith.addf %76, %77 : vector<32x32xf32>
    %79 = arith.addf %3, %78 : vector<32x32xf32>
    %cst_25 = arith.constant dense<0.000000e+00> : vector<32xf32>
    %80 = vector.multi_reduction <add>, %79, %cst_25 [1] : vector<32x32xf32> to vector<32xf32>
    %81 = vector.shape_cast %80 : vector<32xf32> to vector<32x1xf32>
    %cst_26 = arith.constant 3.200000e+01 : f32
    %82 = vector.broadcast %cst_26 : f32 to vector<32x1xf32>
    %83 = arith.divf %81, %82 : vector<32x1xf32>
    %84 = vector.broadcast %83 : vector<32x1xf32> to vector<32x32xf32>
    %85 = arith.subf %79, %84 : vector<32x32xf32>
    %86 = arith.mulf %85, %85 : vector<32x32xf32>
    %cst_27 = arith.constant dense<0.000000e+00> : vector<32xf32>
    %87 = vector.multi_reduction <add>, %86, %cst_27 [1] : vector<32x32xf32> to vector<32xf32>
    %88 = vector.shape_cast %87 : vector<32xf32> to vector<32x1xf32>
    %cst_28 = arith.constant 3.200000e+01 : f32
    %89 = vector.broadcast %cst_28 : f32 to vector<32x1xf32>
    %90 = arith.divf %88, %89 : vector<32x1xf32>
    %91 = vector.broadcast %83 : vector<32x1xf32> to vector<32x32xf32>
    %92 = arith.subf %79, %91 : vector<32x32xf32>
    %cst_29 = arith.constant 9.99999974E-6 : f32
    %93 = vector.broadcast %cst_29 : f32 to vector<32x1xf32>
    %94 = arith.addf %90, %93 : vector<32x1xf32>
    %95 = math.rsqrt %94 : vector<32x1xf32>
    %96 = vector.broadcast %95 : vector<32x1xf32> to vector<32x32xf32>
    %97 = arith.mulf %92, %96 : vector<32x32xf32>
    %98 = vector.broadcast %9 : vector<1x32xf32> to vector<32x32xf32>
    %99 = arith.mulf %97, %98 : vector<32x32xf32>
    %100 = vector.broadcast %10 : vector<1x32xf32> to vector<32x32xf32>
    %101 = arith.addf %99, %100 : vector<32x32xf32>
    %c0_30 = arith.constant 0 : index
    %c0_31 = arith.constant 0 : index
    %c0_32 = arith.constant 0 : index
    %102 = vector.load %arg8[%c0_30, %c0_31, %c0_32] : memref<1x32x128xf32, #tpu.memory_space<vmem>>, vector<1x32x128xf32>
    %103 = vector.shape_cast %102 : vector<1x32x128xf32> to vector<32x128xf32>
    %cst_33 = arith.constant dense<0.000000e+00> : vector<32x128xf32>
    %104 = tpu.matmul %101, %103, %cst_33 {dimension_numbers = #tpu.dot_dimension_numbers<[1], [0], [0], [1], [0, 0, 1, 1], [], []>} : vector<32x32xf32>, vector<32x128xf32>, vector<32x128xf32> -> vector<32x128xf32>
    %105 = vector.broadcast %13 : vector<1x128xf32> to vector<32x128xf32>
    %106 = arith.addf %104, %105 : vector<32x128xf32>
    %cst_34 = arith.constant 0.000000e+00 : f32
    %107 = vector.broadcast %cst_34 : f32 to vector<32x128xf32>
    %108 = arith.maximumf %106, %107 : vector<32x128xf32>
    %c0_35 = arith.constant 0 : index
    %c0_36 = arith.constant 0 : index
    %c0_37 = arith.constant 0 : index
    %109 = vector.load %arg9[%c0_35, %c0_36, %c0_37] : memref<1x128x32xf32, #tpu.memory_space<vmem>>, vector<1x128x32xf32>
    %110 = vector.shape_cast %109 : vector<1x128x32xf32> to vector<128x32xf32>
    %cst_38 = arith.constant dense<0.000000e+00> : vector<32x32xf32>
    %111 = tpu.matmul %108, %110, %cst_38 {dimension_numbers = #tpu.dot_dimension_numbers<[1], [0], [0], [1], [0, 0, 1, 1], [], []>} : vector<32x128xf32>, vector<128x32xf32>, vector<32x32xf32> -> vector<32x32xf32>
    %112 = vector.broadcast %11 : vector<1x32xf32> to vector<32x32xf32>
    %113 = arith.addf %111, %112 : vector<32x32xf32>
    %114 = arith.addf %79, %113 : vector<32x32xf32>
    %c0_39 = arith.constant 0 : index
    %c0_40 = arith.constant 0 : index
    %115 = vector.load %arg13[%c0_39, %c0_40] : memref<32x32xf32, #tpu.memory_space<vmem>>, vector<32x32xf32>
    tpu.vector_store %arg13[%c0_39, %c0_40], %114 {strides = array<i32>} : memref<32x32xf32, #tpu.memory_space<vmem>>, vector<32x32xf32>,
    %c1_i32 = arith.constant 1 : i32
    %116 = arith.cmpi eq, %arg1, %c1_i32 : i32
    %117 = arith.extui %116 : i1 to i32
    %c0_i32_41 = arith.constant 0 : i32
    %118 = arith.cmpi ne, %117, %c0_i32_41 : i32
    scf.if %118 {
      %c0_42 = arith.constant 0 : index
      %c0_43 = arith.constant 0 : index
      %119 = vector.load %arg10[%c0_42, %c0_43] : memref<32x128xf32, #tpu.memory_space<vmem>>, vector<32x128xf32>
      %cst_44 = arith.constant dense<0.000000e+00> : vector<32x128xf32>
      %120 = tpu.matmul %114, %119, %cst_44 {dimension_numbers = #tpu.dot_dimension_numbers<[1], [0], [0], [1], [0, 0, 1, 1], [], []>} : vector<32x32xf32>, vector<32x128xf32>, vector<32x128xf32> -> vector<32x128xf32>
      %c0_45 = arith.constant 0 : index
      %c0_46 = arith.constant 0 : index
      %121 = vector.load %arg11[%c0_45, %c0_46] : memref<1x128xf32, #tpu.memory_space<vmem>>, vector<1x128xf32>
      %122 = vector.broadcast %121 : vector<1x128xf32> to vector<32x128xf32>
      %123 = arith.addf %120, %122 : vector<32x128xf32>
      %cst_47 = arith.constant 0.000000e+00 : f32
      %124 = vector.broadcast %cst_47 : f32 to vector<32x128xf32>
      %125 = arith.maximumf %123, %124 : vector<32x128xf32>
      %126 = vector.shape_cast %125 : vector<32x128xf32> to vector<2x16x128xf32>
      %c0_48 = arith.constant 0 : index
      %c0_49 = arith.constant 0 : index
      %c0_50 = arith.constant 0 : index
      %127 = vector.load %arg12[%c0_48, %c0_49, %c0_50] : memref<2x16x128xf32, #tpu.memory_space<vmem>>, vector<2x16x128xf32>
      tpu.vector_store %arg12[%c0_48, %c0_49, %c0_50], %126 {strides = array<i32>} : memref<2x16x128xf32, #tpu.memory_space<vmem>>, vector<2x16x128xf32>,
    } else {
    }
    return
  }
  func.func @transform_0(%arg0: i32, %arg1: i32) -> (i32, i32, i32) {
    %c0_i32 = arith.constant 0 : i32
    %c0_i32_0 = arith.constant 0 : i32
    %c0_i32_1 = arith.constant 0 : i32
    return %arg0, %c0_i32, %c0_i32_0 : i32, i32, i32
  }
  func.func @transform_1(%arg0: i32, %arg1: i32) -> (i32, i32) {
    %c0_i32 = arith.constant 0 : i32
    %c0_i32_0 = arith.constant 0 : i32
    %c0_i32_1 = arith.constant 0 : i32
    return %c0_i32, %c0_i32_0 : i32, i32
  }
  func.func @transform_2(%arg0: i32, %arg1: i32) -> (i32, i32) {
    %c0_i32 = arith.constant 0 : i32
    %c0_i32_0 = arith.constant 0 : i32
    %c0_i32_1 = arith.constant 0 : i32
    return %c0_i32, %c0_i32_0 : i32, i32
  }
  func.func @transform_3(%arg0: i32, %arg1: i32) -> (i32, i32, i32) {
    %c0_i32 = arith.constant 0 : i32
    %c0_i32_0 = arith.constant 0 : i32
    %c0_i32_1 = arith.constant 0 : i32
    return %arg1, %c0_i32, %c0_i32_0 : i32, i32, i32
  }
  func.func @transform_4(%arg0: i32, %arg1: i32) -> (i32, i32, i32) {
    %c0_i32 = arith.constant 0 : i32
    %c0_i32_0 = arith.constant 0 : i32
    %c0_i32_1 = arith.constant 0 : i32
    return %arg1, %c0_i32, %c0_i32_0 : i32, i32, i32
  }
  func.func @transform_5(%arg0: i32, %arg1: i32) -> (i32, i32, i32) {
    %c0_i32 = arith.constant 0 : i32
    %c0_i32_0 = arith.constant 0 : i32
    %c0_i32_1 = arith.constant 0 : i32
    return %arg1, %c0_i32, %c0_i32_0 : i32, i32, i32
  }
  func.func @transform_6(%arg0: i32, %arg1: i32) -> (i32, i32, i32) {
    %c0_i32 = arith.constant 0 : i32
    %c0_i32_0 = arith.constant 0 : i32
    %c0_i32_1 = arith.constant 0 : i32
    return %arg1, %c0_i32, %c0_i32_0 : i32, i32, i32
  }
  func.func @transform_7(%arg0: i32, %arg1: i32) -> (i32, i32, i32) {
    %c0_i32 = arith.constant 0 : i32
    %c0_i32_0 = arith.constant 0 : i32
    %c0_i32_1 = arith.constant 0 : i32
    return %arg1, %c0_i32, %c0_i32_0 : i32, i32, i32
  }
  func.func @transform_8(%arg0: i32, %arg1: i32) -> (i32, i32) {
    %c0_i32 = arith.constant 0 : i32
    %c0_i32_0 = arith.constant 0 : i32
    %c0_i32_1 = arith.constant 0 : i32
    return %c0_i32, %c0_i32_0 : i32, i32
  }
  func.func @transform_9(%arg0: i32, %arg1: i32) -> (i32, i32) {
    %c0_i32 = arith.constant 0 : i32
    %c0_i32_0 = arith.constant 0 : i32
    %c0_i32_1 = arith.constant 0 : i32
    return %c0_i32, %c0_i32_0 : i32, i32
  }
  func.func @transform_10(%arg0: i32, %arg1: i32) -> (i32, i32, i32) {
    %c0_i32 = arith.constant 0 : i32
    %c0_i32_0 = arith.constant 0 : i32
    %c0_i32_1 = arith.constant 0 : i32
    return %arg0, %c0_i32, %c0_i32_0 : i32, i32, i32
  }
}

</mosaic_0001>

<llo_original>
// kernel: transformer_mel_forward.1
$region0: #{transformer_mel_forward.1}
  #allocation0 [shape = 'u32[]', space=smem, size = 0x4, offset = 0x4, fixed_abs, tag = 'smem constant byte address 0x4 - core index']
  #allocation1 [shape = 'u32[72,128]{1,0:T(1,128)}', space=vmem, size = 0x9000, scoped, tag = 'internal scratch']
  #allocation2 [shape = 'f32[32,32]{1,0:T(8,128)}', space=vmem, size = 0x4000, scoped, tag = 'scratch operand']
  %s0 = inlined_call_operand.vmem [shape: f32[2,16,128], index: 0, kind: input, shape index: {}]
  %s1 = inlined_call_operand.vmem [shape: f32[16,32], index: 1, kind: input, shape index: {}]
  %s2 = inlined_call_operand.vmem [shape: f32[128,32], index: 2, kind: input, shape index: {}]
  %s3 = inlined_call_operand.vmem [shape: f32[2,8,128], index: 3, kind: input, shape index: {}]
  %s4 = inlined_call_operand.vmem [shape: f32[2,32,96], index: 4, kind: input, shape index: {}]
  %s5 = inlined_call_operand.vmem [shape: f32[2,32,32], index: 5, kind: input, shape index: {}]
  %s6 = inlined_call_operand.vmem [shape: f32[2,32,128], index: 6, kind: input, shape index: {}]
  %s7 = inlined_call_operand.vmem [shape: f32[2,128,32], index: 7, kind: input, shape index: {}]
  %s8 = inlined_call_operand.vmem [shape: f32[32,128], index: 8, kind: input, shape index: {}]
  %s9 = inlined_call_operand.vmem [shape: f32[1,128], index: 9, kind: input, shape index: {}]
  %s10 = inlined_call_operand.hbm [shape: f32[2,16,128], index: 10, kind: output, shape index: {}]
  %s11 = sld [smem:[#allocation0]]
  $region81: #{transformer_mel_forward.1} parent=0
    _
  %s13 = ssub.s32 1, %s11
  %s14 = scalar_select 0, %s13, %s11
  $region1: #{transformer_mel_forward.1} parent=0
    #allocation3 [shape = 'u8[16384]{0}', space=vmem, size = 0x4000, scoped, tag = 'output window, operand 0, single buffered']
    #allocation4 [shape = 's32[2]{0}', space=sflag, size = 0x8, scoped, tag = 'scoped memory for transformer_mel_forward.1']
    %15 = vsyncpa [#allocation4], 0
    loop: start=0, step=1, limit=4
    $region2: #{transformer_mel_forward.1} parent=1 // loop_pre_header
      _
    $region3: #{transformer_mel_forward.1} parent=1 // loop_header
      %s17 = sphi 0, %s21
      %p18 = scmp.ge.s32.totalorder %s17, 4
      %s24 = sphi 0, %s36
      %s25 = sphi 0, %s32
      %s26 = sphi 0, %s24
      %s27 = sphi 0, %s25
      %s28 = sphi 0, %s26
      %s29 = sphi 0, %s27
      %s39 = sphi 0, %s41
      %s42 = sphi 0, %s39
      %s43 = sphi 0, %s42
      %s59 = sphi 0, %s43
      %s63 = sphi 0, %s63
      %s65 = sphi 0, %s63
      %s66 = sphi 0, %s65
      %s80 = sphi 0, %s66
      %s84 = sphi 0, %s84
      %s86 = sphi 0, %s84
      %s87 = sphi 0, %s86
      %s101 = sphi 0, %s87
      %s107 = sphi 0, %s109
      %s110 = sphi 0, %s107
      %s111 = sphi 0, %s110
      %s127 = sphi 0, %s111
      %s133 = sphi 0, %s135
      %s136 = sphi 0, %s133
      %s137 = sphi 0, %s136
      %s153 = sphi 0, %s137
      %s159 = sphi 0, %s161
      %s162 = sphi 0, %s159
      %s163 = sphi 0, %s162
      %s179 = sphi 0, %s163
      %s185 = sphi 0, %s187
      %s188 = sphi 0, %s185
      %s189 = sphi 0, %s188
      %s205 = sphi 0, %s189
      %s211 = sphi 0, %s213
      %s214 = sphi 0, %s211
      %s215 = sphi 0, %s214
      %s231 = sphi 0, %s215
      %s235 = sphi 0, %s235
      %s237 = sphi 0, %s235
      %s238 = sphi 0, %s237
      %s252 = sphi 0, %s238
      %s256 = sphi 0, %s256
      %s258 = sphi 0, %s256
      %s259 = sphi 0, %s258
      %s273 = sphi 0, %s259
      %s279 = sphi 0, %s281
      %s282 = sphi 0, %s279
      %s283 = sphi 0, %s282
      %s299 = sphi 0, %s283
    $region4: #{transformer_mel_forward.1} parent=1 // loop_header_branch
      %20 = sbr.rel (%p18) target = $region8
    $region5: #{transformer_mel_forward.1} parent=1 // loop_body
      %s22 = ssub.s32 %s17, 1
      %s23 = ssub.s32 %s17, 2
      %s30 = sadd.s32 1, %s25
      %p31 = scmp.ge.s32.totalorder %s30, 2
      %s32 = scalar_select %p31, 0, %s30
      %s33 = sadd.s32 1, %s24
      %s34 = scalar_select %p31, %s33, %s24
      %p35 = scmp.ge.s32.totalorder %s34, 1
      %s36 = scalar_select %p35, 0, %s34
      %s37 = ssub.s32 %s24, %s36
      %p38 = scmp.eq.s32.totalorder %s37, 0
      %s40 = sadd.s32 %s39, 1
      %s41 = scalar_select %p38, %s39, %s40
      %p44 = pneg %p38
      %p45 = scmp.eq.s32.totalorder %s17, 1
      %p46 = por %p44, %p45
      %p47 = scmp.ne.s32.totalorder %s39, %s42
      %p48 = scmp.eq.s32.totalorder %s17, 0
      %p49 = por %p47, %p48
      %p50 = scmp.ne.s32.totalorder %s39, %s42
      %p51 = scmp.eq.s32.totalorder %s22, 1
      %p52 = por %p50, %p51
      %p53 = scmp.ne.s32.totalorder %s42, %s43
      %p54 = scmp.eq.s32.totalorder %s22, 0
      %p55 = por %p53, %p54
      %p56 = scmp.ne.s32.totalorder %s42, %s43
      %p57 = scmp.eq.s32.totalorder %s23, 1
      %p58 = por %p56, %p57
      %p60 = scmp.ne.s32.totalorder %s43, %s59
      %p61 = scmp.eq.s32.totalorder %s23, 0
      %p62 = por %p60, %p61
      %s64 = sadd.s32 %s63, 1
      %p67 = scmp.eq.s32.totalorder %s17, 1
      %p68 = scmp.ne.s32.totalorder %s63, %s65
      %p69 = scmp.eq.s32.totalorder %s17, 0
      %p70 = por %p68, %p69
      %p71 = scmp.ne.s32.totalorder %s63, %s65
      %p72 = scmp.eq.s32.totalorder %s22, 1
      %p73 = por %p71, %p72
      %p74 = scmp.ne.s32.totalorder %s65, %s66
      %p75 = scmp.eq.s32.totalorder %s22, 0
      %p76 = por %p74, %p75
      %p77 = scmp.ne.s32.totalorder %s65, %s66
      %p78 = scmp.eq.s32.totalorder %s23, 1
      %p79 = por %p77, %p78
      %p81 = scmp.ne.s32.totalorder %s66, %s80
      %p82 = scmp.eq.s32.totalorder %s23, 0
      %p83 = por %p81, %p82
      %s85 = sadd.s32 %s84, 1
      %p88 = scmp.eq.s32.totalorder %s17, 1
      %p89 = scmp.ne.s32.totalorder %s84, %s86
      %p90 = scmp.eq.s32.totalorder %s17, 0
      %p91 = por %p89, %p90
      %p92 = scmp.ne.s32.totalorder %s84, %s86
      %p93 = scmp.eq.s32.totalorder %s22, 1
      %p94 = por %p92, %p93
      %p95 = scmp.ne.s32.totalorder %s86, %s87
      %p96 = scmp.eq.s32.totalorder %s22, 0
      %p97 = por %p95, %p96
      %p98 = scmp.ne.s32.totalorder %s86, %s87
      %p99 = scmp.eq.s32.totalorder %s23, 1
      %p100 = por %p98, %p99
      %p102 = scmp.ne.s32.totalorder %s87, %s101
      %p103 = scmp.eq.s32.totalorder %s23, 0
      %p104 = por %p102, %p103
      %s105 = ssub.s32 %s25, %s32
      %p106 = scmp.eq.s32.totalorder %s105, 0
      %s108 = sadd.s32 %s107, 1
      %s109 = scalar_select %p106, %s107, %s108
      %p112 = pneg %p106
      %p113 = scmp.eq.s32.totalorder %s17, 1
      %p114 = por %p112, %p113
      %p115 = scmp.ne.s32.totalorder %s107, %s110
      %p116 = scmp.eq.s32.totalorder %s17, 0
      %p117 = por %p115, %p116
      %p118 = scmp.ne.s32.totalorder %s107, %s110
      %p119 = scmp.eq.s32.totalorder %s22, 1
      %p120 = por %p118, %p119
      %p121 = scmp.ne.s32.totalorder %s110, %s111
      %p122 = scmp.eq.s32.totalorder %s22, 0
      %p123 = por %p121, %p122
      %p124 = scmp.ne.s32.totalorder %s110, %s111
      %p125 = scmp.eq.s32.totalorder %s23, 1
      %p126 = por %p124, %p125
      %p128 = scmp.ne.s32.totalorder %s111, %s127
      %p129 = scmp.eq.s32.totalorder %s23, 0
      %p130 = por %p128, %p129
      %s131 = ssub.s32 %s25, %s32
      %p132 = scmp.eq.s32.totalorder %s131, 0
      %s134 = sadd.s32 %s133, 1
      %s135 = scalar_select %p132, %s133, %s134
      %p138 = pneg %p132
      %p139 = scmp.eq.s32.totalorder %s17, 1
      %p140 = por %p138, %p139
      %p141 = scmp.ne.s32.totalorder %s133, %s136
      %p142 = scmp.eq.s32.totalorder %s17, 0
      %p143 = por %p141, %p142
      %p144 = scmp.ne.s32.totalorder %s133, %s136
      %p145 = scmp.eq.s32.totalorder %s22, 1
      %p146 = por %p144, %p145
      %p147 = scmp.ne.s32.totalorder %s136, %s137
      %p148 = scmp.eq.s32.totalorder %s22, 0
      %p149 = por %p147, %p148
      %p150 = scmp.ne.s32.totalorder %s136, %s137
      %p151 = scmp.eq.s32.totalorder %s23, 1
      %p152 = por %p150, %p151
      %p154 = scmp.ne.s32.totalorder %s137, %s153
      %p155 = scmp.eq.s32.totalorder %s23, 0
      %p156 = por %p154, %p155
      %s157 = ssub.s32 %s25, %s32
      %p158 = scmp.eq.s32.totalorder %s157, 0
      %s160 = sadd.s32 %s159, 1
      %s161 = scalar_select %p158, %s159, %s160
      %p164 = pneg %p158
      %p165 = scmp.eq.s32.totalorder %s17, 1
      %p166 = por %p164, %p165
      %p167 = scmp.ne.s32.totalorder %s159, %s162
      %p168 = scmp.eq.s32.totalorder %s17, 0
      %p169 = por %p167, %p168
      %p170 = scmp.ne.s32.totalorder %s159, %s162
      %p171 = scmp.eq.s32.totalorder %s22, 1
      %p172 = por %p170, %p171
      %p173 = scmp.ne.s32.totalorder %s162, %s163
      %p174 = scmp.eq.s32.totalorder %s22, 0
      %p175 = por %p173, %p174
      %p176 = scmp.ne.s32.totalorder %s162, %s163
      %p177 = scmp.eq.s32.totalorder %s23, 1
      %p178 = por %p176, %p177
      %p180 = scmp.ne.s32.totalorder %s163, %s179
      %p181 = scmp.eq.s32.totalorder %s23, 0
      %p182 = por %p180, %p181
      %s183 = ssub.s32 %s25, %s32
      %p184 = scmp.eq.s32.totalorder %s183, 0
      %s186 = sadd.s32 %s185, 1
      %s187 = scalar_select %p184, %s185, %s186
      %p190 = pneg %p184
      %p191 = scmp.eq.s32.totalorder %s17, 1
      %p192 = por %p190, %p191
      %p193 = scmp.ne.s32.totalorder %s185, %s188
      %p194 = scmp.eq.s32.totalorder %s17, 0
      %p195 = por %p193, %p194
      %p196 = scmp.ne.s32.totalorder %s185, %s188
      %p197 = scmp.eq.s32.totalorder %s22, 1
      %p198 = por %p196, %p197
      %p199 = scmp.ne.s32.totalorder %s188, %s189
      %p200 = scmp.eq.s32.totalorder %s22, 0
      %p201 = por %p199, %p200
      %p202 = scmp.ne.s32.totalorder %s188, %s189
      %p203 = scmp.eq.s32.totalorder %s23, 1
      %p204 = por %p202, %p203
      %p206 = scmp.ne.s32.totalorder %s189, %s205
      %p207 = scmp.eq.s32.totalorder %s23, 0
      %p208 = por %p206, %p207
      %s209 = ssub.s32 %s25, %s32
      %p210 = scmp.eq.s32.totalorder %s209, 0
      %s212 = sadd.s32 %s211, 1
      %s213 = scalar_select %p210, %s211, %s212
      %p216 = pneg %p210
      %p217 = scmp.eq.s32.totalorder %s17, 1
      %p218 = por %p216, %p217
      %p219 = scmp.ne.s32.totalorder %s211, %s214
      %p220 = scmp.eq.s32.totalorder %s17, 0
      %p221 = por %p219, %p220
      %p222 = scmp.ne.s32.totalorder %s211, %s214
      %p223 = scmp.eq.s32.totalorder %s22, 1
      %p224 = por %p222, %p223
      %p225 = scmp.ne.s32.totalorder %s214, %s215
      %p226 = scmp.eq.s32.totalorder %s22, 0
      %p227 = por %p225, %p226
      %p228 = scmp.ne.s32.totalorder %s214, %s215
      %p229 = scmp.eq.s32.totalorder %s23, 1
      %p230 = por %p228, %p229
      %p232 = scmp.ne.s32.totalorder %s215, %s231
      %p233 = scmp.eq.s32.totalorder %s23, 0
      %p234 = por %p232, %p233
      %s236 = sadd.s32 %s235, 1
      %p239 = scmp.eq.s32.totalorder %s17, 1
      %p240 = scmp.ne.s32.totalorder %s235, %s237
      %p241 = scmp.eq.s32.totalorder %s17, 0
      %p242 = por %p240, %p241
      %p243 = scmp.ne.s32.totalorder %s235, %s237
      %p244 = scmp.eq.s32.totalorder %s22, 1
      %p245 = por %p243, %p244
      %p246 = scmp.ne.s32.totalorder %s237, %s238
      %p247 = scmp.eq.s32.totalorder %s22, 0
      %p248 = por %p246, %p247
      %p249 = scmp.ne.s32.totalorder %s237, %s238
      %p250 = scmp.eq.s32.totalorder %s23, 1
      %p251 = por %p249, %p250
      %p253 = scmp.ne.s32.totalorder %s238, %s252
      %p254 = scmp.eq.s32.totalorder %s23, 0
      %p255 = por %p253, %p254
      %s257 = sadd.s32 %s256, 1
      %p260 = scmp.eq.s32.totalorder %s17, 1
      %p261 = scmp.ne.s32.totalorder %s256, %s258
      %p262 = scmp.eq.s32.totalorder %s17, 0
      %p263 = por %p261, %p262
      %p264 = scmp.ne.s32.totalorder %s256, %s258
      %p265 = scmp.eq.s32.totalorder %s22, 1
      %p266 = por %p264, %p265
      %p267 = scmp.ne.s32.totalorder %s258, %s259
      %p268 = scmp.eq.s32.totalorder %s22, 0
      %p269 = por %p267, %p268
      %p270 = scmp.ne.s32.totalorder %s258, %s259
      %p271 = scmp.eq.s32.totalorder %s23, 1
      %p272 = por %p270, %p271
      %p274 = scmp.ne.s32.totalorder %s259, %s273
      %p275 = scmp.eq.s32.totalorder %s23, 0
      %p276 = por %p274, %p275
      %s277 = ssub.s32 %s24, %s36
      %p278 = scmp.eq.s32.totalorder %s277, 0
      %s280 = sadd.s32 %s279, 1
      %s281 = scalar_select %p278, %s279, %s280
      %p284 = pneg %p278
      %p285 = scmp.eq.s32.totalorder %s17, 1
      %p286 = por %p284, %p285
      %p287 = scmp.ne.s32.totalorder %s279, %s282
      %p288 = scmp.eq.s32.totalorder %s17, 0
      %p289 = por %p287, %p288
      %p290 = scmp.ne.s32.totalorder %s279, %s282
      %p291 = scmp.eq.s32.totalorder %s22, 1
      %p292 = por %p290, %p291
      %p293 = scmp.ne.s32.totalorder %s282, %s283
      %p294 = scmp.eq.s32.totalorder %s22, 0
      %p295 = por %p293, %p294
      %p296 = scmp.ne.s32.totalorder %s282, %s283
      %p297 = scmp.eq.s32.totalorder %s23, 1
      %p298 = por %p296, %p297
      %p300 = scmp.ne.s32.totalorder %s283, %s299
      %p301 = scmp.eq.s32.totalorder %s23, 0
      %p302 = por %p300, %p301
      %p303 = scmp.le.s32.totalorder 1, %s17
      %p304 = scmp.lt.s32.totalorder %s17, 3
      %p305 = pnand %p303, %p304
      %p306 = pneg %p305
      // Predicated region
      $region9: #{transformer_mel_forward.1} parent=5 // pred_check
        _
      $region10: #{transformer_mel_forward.1} parent=5 // pred_check_branch
        %308 = sbr.rel (%p305) target = $region12
      $region11: #{transformer_mel_forward.1} parent=5 // pred_region
        %s309 = ssub.s32 %s17, 1
        // Predicated region
        $region13: #{transformer_mel_forward.1} parent=11 // pred_check
          %p310 = pneg %p55
        $region14: #{transformer_mel_forward.1} parent=11 // pred_check_branch
          %312 = sbr.rel (%p310) target = $region16
        $region15: #{transformer_mel_forward.1} parent=11 // pred_region
          %s313 = smul.u32 2, %s26
          %p314 = scmp.lt.s32.totalorder %s313, 1
          %s315 = scalar_select %p314, %s313, 1
          %s316 = smul.addr %s315, 2
          %s317 = smul.addr %s316, 8
          %s318 = scalar_lea.vmem %s0, %s317
          %s319 = smul.u32 2, %s26
        $region16: #{transformer_mel_forward.1} parent=11 // pred_fallthru
          _
        // Predicated region
        $region17: #{transformer_mel_forward.1} parent=11 // pred_check
          %p320 = pneg %p76
        $region18: #{transformer_mel_forward.1} parent=11 // pred_check_branch
          %322 = sbr.rel (%p320) target = $region20
        $region19: #{transformer_mel_forward.1} parent=11 // pred_region
          _
        $region20: #{transformer_mel_forward.1} parent=11 // pred_fallthru
          _
        // Predicated region
        $region21: #{transformer_mel_forward.1} parent=11 // pred_check
          %p323 = pneg %p97
        $region22: #{transformer_mel_forward.1} parent=11 // pred_check_branch
          %325 = sbr.rel (%p323) target = $region24
        $region23: #{transformer_mel_forward.1} parent=11 // pred_region
          _
        $region24: #{transformer_mel_forward.1} parent=11 // pred_fallthru
          _
        // Predicated region
        $region25: #{transformer_mel_forward.1} parent=11 // pred_check
          %p326 = pneg %p248
        $region26: #{transformer_mel_forward.1} parent=11 // pred_check_branch
          %328 = sbr.rel (%p326) target = $region28
        $region27: #{transformer_mel_forward.1} parent=11 // pred_region
          _
        $region28: #{transformer_mel_forward.1} parent=11 // pred_fallthru
          _
        // Predicated region
        $region29: #{transformer_mel_forward.1} parent=11 // pred_check
          %p329 = pneg %p269
        $region30: #{transformer_mel_forward.1} parent=11 // pred_check_branch
          %331 = sbr.rel (%p329) target = $region32
        $region31: #{transformer_mel_forward.1} parent=11 // pred_region
          _
        $region32: #{transformer_mel_forward.1} parent=11 // pred_fallthru
          _
      $region12: #{transformer_mel_forward.1} parent=5 // pred_fallthru
        _
      %p332 = scmp.lt.s32.totalorder %s17, 2
      // Predicated region
      $region33: #{transformer_mel_forward.1} parent=5 // pred_check
        %p333 = pneg %p332
      $region34: #{transformer_mel_forward.1} parent=5 // pred_check_branch
        %335 = sbr.rel (%p333) target = $region36
      $region35: #{transformer_mel_forward.1} parent=5 // pred_region
        // Predicated region
        $region37: #{transformer_mel_forward.1} parent=35 // pred_check
          %p336 = pneg %p117
        $region38: #{transformer_mel_forward.1} parent=35 // pred_check_branch
          %338 = sbr.rel (%p336) target = $region40
        $region39: #{transformer_mel_forward.1} parent=35 // pred_region
          %p339 = scmp.lt.s32.totalorder %s25, 1
          %s340 = scalar_select %p339, %s25, 1
          %s341 = smul.addr %s340, 8
          %s342 = scalar_lea.vmem %s3, %s341
        $region40: #{transformer_mel_forward.1} parent=35 // pred_fallthru
          _
        // Predicated region
        $region41: #{transformer_mel_forward.1} parent=35 // pred_check
          %p343 = pneg %p143
        $region42: #{transformer_mel_forward.1} parent=35 // pred_check_branch
          %345 = sbr.rel (%p343) target = $region44
        $region43: #{transformer_mel_forward.1} parent=35 // pred_region
          %p346 = scmp.lt.s32.totalorder %s25, 1
          %s347 = scalar_select %p346, %s25, 1
          %s348 = smul.addr %s347, 4
          %s349 = smul.addr %s348, 8
          %s350 = scalar_lea.vmem %s4, %s349
        $region44: #{transformer_mel_forward.1} parent=35 // pred_fallthru
          _
        // Predicated region
        $region45: #{transformer_mel_forward.1} parent=35 // pred_check
          %p351 = pneg %p169
        $region46: #{transformer_mel_forward.1} parent=35 // pred_check_branch
          %353 = sbr.rel (%p351) target = $region48
        $region47: #{transformer_mel_forward.1} parent=35 // pred_region
          %p354 = scmp.lt.s32.totalorder %s25, 1
          %s355 = scalar_select %p354, %s25, 1
          %s356 = smul.addr %s355, 4
          %s357 = smul.addr %s356, 8
          %s358 = scalar_lea.vmem %s5, %s357
        $region48: #{transformer_mel_forward.1} parent=35 // pred_fallthru
          _
        // Predicated region
        $region49: #{transformer_mel_forward.1} parent=35 // pred_check
          %p359 = pneg %p195
        $region50: #{transformer_mel_forward.1} parent=35 // pred_check_branch
          %361 = sbr.rel (%p359) target = $region52
        $region51: #{transformer_mel_forward.1} parent=35 // pred_region
          %p362 = scmp.lt.s32.totalorder %s25, 1
          %s363 = scalar_select %p362, %s25, 1
          %s364 = smul.addr %s363, 4
          %s365 = smul.addr %s364, 8
          %s366 = scalar_lea.vmem %s6, %s365
        $region52: #{transformer_mel_forward.1} parent=35 // pred_fallthru
          _
        // Predicated region
        $region53: #{transformer_mel_forward.1} parent=35 // pred_check
          %p367 = pneg %p221
        $region54: #{transformer_mel_forward.1} parent=35 // pred_check_branch
          %369 = sbr.rel (%p367) target = $region56
        $region55: #{transformer_mel_forward.1} parent=35 // pred_region
          %p370 = scmp.lt.s32.totalorder %s25, 1
          %s371 = scalar_select %p370, %s25, 1
          %s372 = smul.addr %s371, 16
          %s373 = smul.addr %s372, 8
          %s374 = scalar_lea.vmem %s7, %s373
        $region56: #{transformer_mel_forward.1} parent=35 // pred_fallthru
          _
      $region36: #{transformer_mel_forward.1} parent=5 // pred_fallthru
        _
      %p375 = scmp.le.s32.totalorder 1, %s17
      %p376 = scmp.lt.s32.totalorder %s17, 3
      %p377 = pnand %p375, %p376
      %p378 = pneg %p377
      // Predicated region
      $region57: #{transformer_mel_forward.1} parent=5 // pred_check
        _
      $region58: #{transformer_mel_forward.1} parent=5 // pred_check_branch
        %380 = sbr.rel (%p377) target = $region60
      $region59: #{transformer_mel_forward.1} parent=5 // pred_region
        %s381 = ssub.s32 %s17, 1
        %s382 = smul.u32 2, %s26
        %p383 = scmp.lt.s32.totalorder %s382, 1
        %s384 = scalar_select %p383, %s382, 1
        %s385 = smul.addr %s384, 2
        %s386 = smul.addr %s385, 8
        %s387 = scalar_lea.vmem %s0, %s386
        %p388 = pneg %p55
        %p389 = pneg %p52
        %p390 = pneg %p76
        %p391 = pneg %p73
        %p392 = pneg %p97
        %p393 = pneg %p94
        %p394 = scmp.lt.s32.totalorder %s27, 1
        %s395 = scalar_select %p394, %s27, 1
        %s396 = smul.addr %s395, 8
        %s397 = scalar_lea.vmem %s3, %s396
        %p398 = pneg %p123
        %p399 = pneg %p120
        %p400 = scmp.lt.s32.totalorder %s27, 1
        %s401 = scalar_select %p400, %s27, 1
        %s402 = smul.addr %s401, 4
        %s403 = smul.addr %s402, 8
        %s404 = scalar_lea.vmem %s4, %s403
        %p405 = pneg %p149
        %p406 = pneg %p146
        %p407 = scmp.lt.s32.totalorder %s27, 1
        %s408 = scalar_select %p407, %s27, 1
        %s409 = smul.addr %s408, 4
        %s410 = smul.addr %s409, 8
        %s411 = scalar_lea.vmem %s5, %s410
        %p412 = pneg %p175
        %p413 = pneg %p172
        %p414 = scmp.lt.s32.totalorder %s27, 1
        %s415 = scalar_select %p414, %s27, 1
        %s416 = smul.addr %s415, 4
        %s417 = smul.addr %s416, 8
        %s418 = scalar_lea.vmem %s6, %s417
        %p419 = pneg %p201
        %p420 = pneg %p198
        %p421 = scmp.lt.s32.totalorder %s27, 1
        %s422 = scalar_select %p421, %s27, 1
        %s423 = smul.addr %s422, 16
        %s424 = smul.addr %s423, 8
        %s425 = scalar_lea.vmem %s7, %s424
        %p426 = pneg %p227
        %p427 = pneg %p224
        %p428 = pneg %p248
        %p429 = pneg %p245
        %p430 = pneg %p269
        %p431 = pneg %p266
        %p432 = pneg %p295
        %p433 = pneg %p292
        %s434 = smul.u32 2, %s26
        %p435 = scmp.lt.s32.totalorder %s434, 1
        %s436 = scalar_select %p435, %s434, 1
        %s437 = smul.addr %s436, 2
        %s438 = smul.addr %s437, 8
        %s439 = scalar_lea.vmem %s0, %s438
        %s440 = smul.u32 2, %s26
        %p441 = scmp.lt.s32.totalorder %s27, 1
        %s442 = scalar_select %p441, %s27, 1
        %s443 = smul.addr %s442, 8
        %s444 = scalar_lea.vmem %s3, %s443
        %p445 = scmp.lt.s32.totalorder %s27, 1
        %s446 = scalar_select %p445, %s27, 1
        %s447 = smul.addr %s446, 4
        %s448 = smul.addr %s447, 8
        %s449 = scalar_lea.vmem %s4, %s448
        %p450 = scmp.lt.s32.totalorder %s27, 1
        %s451 = scalar_select %p450, %s27, 1
        %s452 = smul.addr %s451, 4
        %s453 = smul.addr %s452, 8
        %s454 = scalar_lea.vmem %s5, %s453
        %p455 = scmp.lt.s32.totalorder %s27, 1
        %s456 = scalar_select %p455, %s27, 1
        %s457 = smul.addr %s456, 4
        %s458 = smul.addr %s457, 8
        %s459 = scalar_lea.vmem %s6, %s458
        %p460 = scmp.lt.s32.totalorder %s27, 1
        %s461 = scalar_select %p460, %s27, 1
        %s462 = smul.addr %s461, 16
        %s463 = smul.addr %s462, 8
        %s464 = scalar_lea.vmem %s7, %s463
        %s465 = smul.u32 2, %s26
        %p466 = scmp.eq.s32.totalorder %s27, 0
        // Predicated region
        $region61: #{transformer_mel_forward.1} parent=59 // pred_check
          %p467 = pneg %p466
        $region62: #{transformer_mel_forward.1} parent=59 // pred_check_branch
          %469 = sbr.rel (%p467) target = $region64
        $region63: #{transformer_mel_forward.1} parent=59 // pred_region
          %v470 = vld [vmem:[%s439] sm:$0xff]
          %v471 = vld [vmem:[%s439 + $0x8] sm:$0xff]
          %v472 = vld [vmem:[%s439 + $0x10] sm:$0xff]
          %v473 = vld [vmem:[%s439 + $0x18] sm:$0xff]
          %v474 = vld [vmem:[%s2] sm:$0xff]
          %v475 = vld [vmem:[%s2 + $0x8] sm:$0xff]
          %v476 = vld [vmem:[%s2 + $0x10] sm:$0xff]
          %v477 = vld [vmem:[%s2 + $0x18] sm:$0xff]
          %v478 = vld [vmem:[%s2 + $0x20] sm:$0xff]
          %v479 = vld [vmem:[%s2 + $0x28] sm:$0xff]
          %v480 = vld [vmem:[%s2 + $0x30] sm:$0xff]
          %v481 = vld [vmem:[%s2 + $0x38] sm:$0xff]
          %v482 = vld [vmem:[%s2 + $0x40] sm:$0xff]
          %v483 = vld [vmem:[%s2 + $0x48] sm:$0xff]
          %v484 = vld [vmem:[%s2 + $0x50] sm:$0xff]
          %v485 = vld [vmem:[%s2 + $0x58] sm:$0xff]
          %v486 = vld [vmem:[%s2 + $0x60] sm:$0xff]
          %v487 = vld [vmem:[%s2 + $0x68] sm:$0xff]
          %v488 = vld [vmem:[%s2 + $0x70] sm:$0xff]
          %v489 = vld [vmem:[%s2 + $0x78] sm:$0xff]
          %490 = vmatpush.msra.mxu0 %v489
          %491 = vmatpush.msra.mxu0 %v488
          %492 = vmatpush.msra.mxu0 %v487
          %493 = vmatpush.msra.mxu0 %v486
          %494 = vmatpush.msra.mxu0 %v485
          %495 = vmatpush.msra.mxu0 %v484
          %496 = vmatpush.msra.mxu0 %v483
          %497 = vmatpush.msra.mxu0 %v482
          %498 = vmatpush.msra.mxu0 %v481
          %499 = vmatpush.msra.mxu0 %v480
          %500 = vmatpush.msra.mxu0 %v479
          %501 = vmatpush.msra.mxu0 %v478
          %502 = vmatpush.msra.mxu0 %v477
          %503 = vmatpush.msra.mxu0 %v476
          %504 = vmatpush.msra.mxu0 %v475
          %505 = vmatpush.msra.mxu0 %v474
          %506 = vmatmul.f32.gmra.mxu0 %v470
          %v507 = vpop.f32.mrf.mxu0
          %v508 = vadd.f32 0.0, %v507
          %509 = vmatmul.f32.gmra.mxu0 %v471
          %v510 = vpop.f32.mrf.mxu0
          %v511 = vadd.f32 0.0, %v510
          %512 = vmatmul.f32.gmra.mxu0 %v472
          %v513 = vpop.f32.mrf.mxu0
          %v514 = vadd.f32 0.0, %v513
          %515 = vmatmul.f32.gmra.mxu0 %v473
          %v516 = vpop.f32.mrf.mxu0
          %v517 = vadd.f32 0.0, %v516
          %518 = vdwg.mxu0
          %v519 = vld [vmem:[%s1] sm:$0xff]
          %v520 = vld [vmem:[%s1 + $0x8] sm:$0xff]
          %v521 = vadd.f32 %v508, %v519
          %v522 = vadd.f32 %v511, %v520
          %v523 = vadd.f32 %v514, %v519
          %v524 = vadd.f32 %v517, %v520
          %vm525 = vcmask 261120
          %526 = vst.msk [vmem:[#allocation2] sm:$0xff] %vm525, %v521
          %527 = vst.msk [vmem:[#allocation2 + $0x8] sm:$0xff] %vm525, %v522
          %528 = vst.msk [vmem:[#allocation2 + $0x10] sm:$0xff] %vm525, %v523
          %529 = vst.msk [vmem:[#allocation2 + $0x18] sm:$0xff] %vm525, %v524
        $region64: #{transformer_mel_forward.1} parent=59 // pred_fallthru
          _
        %v530 = vld [vmem:[#allocation2] sm:$0xff]
        %v531 = vld [vmem:[#allocation2 + $0x8] sm:$0xff]
        %v532 = vld [vmem:[#allocation2 + $0x10] sm:$0xff]
        %v533 = vld [vmem:[#allocation2 + $0x18] sm:$0xff]
        %v534 = vld [vmem:[%s444] sm:$0xff]
        %vm535 = vcmask 261120
        %v536 = vsel %vm535, %v530, 0.0
        %537 = vadd.xlane.f32.xlu0 %v536
        %v538 = vpop.xlane.xlu0 %537
        %v539 = vsel %vm535, %v531, 0.0
        %540 = vadd.xlane.f32.xlu0 %v539
        %v541 = vpop.xlane.xlu0 %540
        %v542 = vsel %vm535, %v532, 0.0
        %543 = vadd.xlane.f32.xlu0 %v542
        %v544 = vpop.xlane.xlu0 %543
        %v545 = vsel %vm535, %v533, 0.0
        %546 = vadd.xlane.f32.xlu0 %v545
        %v547 = vpop.xlane.xlu0 %546
        %v548 = vrcp.pop 32.0
        %v549 = vmul.f32 32.0, %v548
        %v550 = vsub.f32 1.0, %v549
        %v551 = vmul.f32 %v548, %v550
        %v552 = vadd.f32 %v548, %v551
        %vm553 = vweird.f32 %v548
        %v554 = vsel %vm553, %v548, %v552
        %v555 = vmul.f32 %v538, %v554
        %v556 = vmul.f32 %v541, %v554
        %v557 = vmul.f32 %v544, %v554
        %v558 = vmul.f32 %v547, %v554
        %v559 = vsub.f32 %v530, %v555
        %v560 = vsub.f32 %v531, %v556
        %v561 = vsub.f32 %v532, %v557
        %v562 = vsub.f32 %v533, %v558
        %v563 = vmul.f32 %v559, %v559
        %v564 = vmul.f32 %v560, %v560
        %v565 = vmul.f32 %v561, %v561
        %v566 = vmul.f32 %v562, %v562
        %v567 = vsel %vm535, %v563, 0.0
        %568 = vadd.xlane.f32.xlu0 %v567
        %v569 = vpop.xlane.xlu0 %568
        %v570 = vsel %vm535, %v564, 0.0
        %571 = vadd.xlane.f32.xlu0 %v570
        %v572 = vpop.xlane.xlu0 %571
        %v573 = vsel %vm535, %v565, 0.0
        %574 = vadd.xlane.f32.xlu0 %v573
        %v575 = vpop.xlane.xlu0 %574
        %v576 = vsel %vm535, %v566, 0.0
        %577 = vadd.xlane.f32.xlu0 %v576
        %v578 = vpop.xlane.xlu0 %577
        %v579 = vmul.f32 %v569, %v554
        %v580 = vmul.f32 %v572, %v554
        %v581 = vmul.f32 %v575, %v554
        %v582 = vmul.f32 %v578, %v554
        %v583 = vadd.f32 %v579, 1e-05
        %v584 = vadd.f32 %v580, 1e-05
        %v585 = vadd.f32 %v581, 1e-05
        %v586 = vadd.f32 %v582, 1e-05
        %v587 = vrsqrt.pop %v583
        %v588 = vmul.f32 %v587, %v583
        %v589 = vmul.f32 %v588, %v587
        %v590 = vmul.f32 0.5, %v589
        %v591 = vsub.f32 1.5, %v590
        %v592 = vmul.f32 %v587, %v591
        %vm593 = vweird.f32 %v583
        %vm594 = vweird.f32 %v587
        %vm595 = vmor %vm593, %vm594
        %v596 = vsel %vm595, %v587, %v592
        %v597 = vrsqrt.pop %v584
        %v598 = vmul.f32 %v597, %v584
        %v599 = vmul.f32 %v598, %v597
        %v600 = vmul.f32 0.5, %v599
        %v601 = vsub.f32 1.5, %v600
        %v602 = vmul.f32 %v597, %v601
        %vm603 = vweird.f32 %v584
        %vm604 = vweird.f32 %v597
        %vm605 = vmor %vm603, %vm604
        %v606 = vsel %vm605, %v597, %v602
        %v607 = vrsqrt.pop %v585
        %v608 = vmul.f32 %v607, %v585
        %v609 = vmul.f32 %v608, %v607
        %v610 = vmul.f32 0.5, %v609
        %v611 = vsub.f32 1.5, %v610
        %v612 = vmul.f32 %v607, %v611
        %vm613 = vweird.f32 %v585
        %vm614 = vweird.f32 %v607
        %vm615 = vmor %vm613, %vm614
        %v616 = vsel %vm615, %v607, %v612
        %v617 = vrsqrt.pop %v586
        %v618 = vmul.f32 %v617, %v586
        %v619 = vmul.f32 %v618, %v617
        %v620 = vmul.f32 0.5, %v619
        %v621 = vsub.f32 1.5, %v620
        %v622 = vmul.f32 %v617, %v621
        %vm623 = vweird.f32 %v586
        %vm624 = vweird.f32 %v617
        %vm625 = vmor %vm623, %vm624
        %v626 = vsel %vm625, %v617, %v622
        %v627 = vmul.f32 %v559, %v596
        %v628 = vmul.f32 %v560, %v606
        %v629 = vmul.f32 %v561, %v616
        %v630 = vmul.f32 %v562, %v626
        %v631 = vperm.slane %v534, 0
        %v632 = vmul.f32 %v627, %v631
        %v633 = vmul.f32 %v628, %v631
        %v634 = vmul.f32 %v629, %v631
        %v635 = vmul.f32 %v630, %v631
        %v636 = vperm.slane %v534, 1
        %v637 = vadd.f32 %v632, %v636
        %v638 = vadd.f32 %v633, %v636
        %v639 = vadd.f32 %v634, %v636
        %v640 = vadd.f32 %v635, %v636
        %v641 = vld [vmem:[%s449] sm:$0xff]
        %v642 = vld [vmem:[%s449 + $0x8] sm:$0xff]
        %v643 = vld [vmem:[%s449 + $0x10] sm:$0xff]
        %v644 = vld [vmem:[%s449 + $0x18] sm:$0xff]
        %v645 = vperm.slane %v534, 6
        %v647 = vsel %vm535, %v637, 0
        %v650 = vsel %vm535, %v638, 0
        %v653 = vsel %vm535, %v639, 0
        %v656 = vsel %vm535, %v640, 0
        %658 = vmatpush.msra.mxu0 0.0
        %659 = vmatpush.msra.mxu0 0.0
        %660 = vmatpush.msra.mxu0 0.0
        %661 = vmatpush.msra.mxu0 0.0
        %662 = vmatpush.msra.mxu0 0.0
        %663 = vmatpush.msra.mxu0 0.0
        %664 = vmatpush.msra.mxu0 0.0
        %665 = vmatpush.msra.mxu0 0.0
        %666 = vmatpush.msra.mxu0 0.0
        %667 = vmatpush.msra.mxu0 0.0
        %668 = vmatpush.msra.mxu0 0.0
        %669 = vmatpush.msra.mxu0 0.0
        %670 = vmatpush.msra.mxu0 %v644
        %671 = vmatpush.msra.mxu0 %v643
        %672 = vmatpush.msra.mxu0 %v642
        %673 = vmatpush.msra.mxu0 %v641
        %674 = vmatmul.f32.gmra.mxu0 %v647
        %v675 = vpop.f32.mrf.mxu0
        %v676 = vadd.f32 %v645, %v675
        %677 = vmatmul.f32.gmra.mxu0 %v650
        %v678 = vpop.f32.mrf.mxu0
        %v679 = vadd.f32 %v645, %v678
        %680 = vmatmul.f32.gmra.mxu0 %v653
        %v681 = vpop.f32.mrf.mxu0
        %v682 = vadd.f32 %v645, %v681
        %683 = vmatmul.f32.gmra.mxu0 %v656
        %v684 = vpop.f32.mrf.mxu0
        %v685 = vadd.f32 %v645, %v684
        %686 = vdwg.mxu0
        %689 = vrot.lane.b32.xlu0 %v676, 96
        %v690 = vpop.permute.xlu0 %689
        %691 = vrot.lane.b32.xlu0 %v679, 96
        %v692 = vpop.permute.xlu0 %691
        %vm693 = vcmask 130048
        %v694 = vsel %vm693, %v676, 0
        %v696 = vsel %vm693, %v679, 0
        %v698 = vsel %vm693, %v690, 0
        %v700 = vsel %vm693, %v692, 0
        %702 = vmatpush.xpose.msra.mxu0 0.0
        %703 = vmatpush.xpose.msra.mxu0 0.0
        %704 = vmatpush.xpose.msra.mxu0 0.0
        %705 = vmatpush.xpose.msra.mxu0 0.0
        %706 = vmatpush.xpose.msra.mxu0 0.0
        %707 = vmatpush.xpose.msra.mxu0 0.0
        %708 = vmatpush.xpose.msra.mxu0 0.0
        %709 = vmatpush.xpose.msra.mxu0 0.0
        %710 = vmatpush.xpose.msra.mxu0 0.0
        %711 = vmatpush.xpose.msra.mxu0 0.0
        %712 = vmatpush.xpose.msra.mxu0 0.0
        %713 = vmatpush.xpose.msra.mxu0 0.0
        %714 = vmatpush.xpose.msra.mxu0 0.0
        %715 = vmatpush.xpose.msra.mxu0 0.0
        %716 = vmatpush.xpose.msra.mxu0 %v700
        %717 = vmatpush.xpose.msra.mxu0 %v698
        %718 = vmatmul.f32.gmra.mxu0 %v694
        %v719 = vpop.f32.mrf.mxu0
        %v720 = vadd.f32 0.0, %v719
        %721 = vmatmul.f32.gmra.mxu0 %v696
        %v722 = vpop.f32.mrf.mxu0
        %v723 = vadd.f32 0.0, %v722
        %724 = vdwg.mxu0
        %727 = vrot.lane.b32.xlu0 %v682, 96
        %v728 = vpop.permute.xlu0 %727
        %729 = vrot.lane.b32.xlu0 %v685, 96
        %v730 = vpop.permute.xlu0 %729
        %v731 = vsel %vm693, %v682, 0
        %v733 = vsel %vm693, %v685, 0
        %v735 = vsel %vm693, %v728, 0
        %v737 = vsel %vm693, %v730, 0
        %739 = vmatpush.xpose.msra.mxu0 0.0
        %740 = vmatpush.xpose.msra.mxu0 0.0
        %741 = vmatpush.xpose.msra.mxu0 0.0
        %742 = vmatpush.xpose.msra.mxu0 0.0
        %743 = vmatpush.xpose.msra.mxu0 0.0
        %744 = vmatpush.xpose.msra.mxu0 0.0
        %745 = vmatpush.xpose.msra.mxu0 0.0
        %746 = vmatpush.xpose.msra.mxu0 0.0
        %747 = vmatpush.xpose.msra.mxu0 0.0
        %748 = vmatpush.xpose.msra.mxu0 0.0
        %749 = vmatpush.xpose.msra.mxu0 0.0
        %750 = vmatpush.xpose.msra.mxu0 0.0
        %751 = vmatpush.xpose.msra.mxu0 0.0
        %752 = vmatpush.xpose.msra.mxu0 0.0
        %753 = vmatpush.xpose.msra.mxu0 %v737
        %754 = vmatpush.xpose.msra.mxu0 %v735
        %755 = vmatmul.f32.gmra.mxu0 %v731
        %v756 = vpop.f32.mrf.mxu0
        %v757 = vadd.f32 0.0, %v756
        %758 = vmatmul.f32.gmra.mxu0 %v733
        %v759 = vpop.f32.mrf.mxu0
        %v760 = vadd.f32 0.0, %v759
        %761 = vdwg.mxu0
        %v762 = vsel %vm693, %v720, -inf
        %763 = vmax.xlane.f32.xlu0 %v762
        %v764 = vpop.xlane.xlu0 %763
        %v765 = vsel %vm693, %v723, -inf
        %766 = vmax.xlane.f32.xlu0 %v765
        %v767 = vpop.xlane.xlu0 %766
        %v768 = vsel %vm693, %v757, -inf
        %769 = vmax.xlane.f32.xlu0 %v768
        %v770 = vpop.xlane.xlu0 %769
        %v771 = vsel %vm693, %v760, -inf
        %772 = vmax.xlane.f32.xlu0 %v771
        %v773 = vpop.xlane.xlu0 %772
        %v774 = vsub.f32 %v720, %v764
        %v775 = vsub.f32 %v723, %v767
        %v776 = vsub.f32 %v757, %v770
        %v777 = vsub.f32 %v760, %v773
        %v778 = vmul.f32 %v774, 1.442695
        %v779 = vpow.pop %v778
        %v780 = vmul.f32 %v775, 1.442695
        %v781 = vpow.pop %v780
        %v782 = vmul.f32 %v776, 1.442695
        %v783 = vpow.pop %v782
        %v784 = vmul.f32 %v777, 1.442695
        %v785 = vpow.pop %v784
        %v786 = vsel %vm693, %v779, 0.0
        %787 = vadd.xlane.f32.xlu0 %v786
        %v788 = vpop.xlane.xlu0 %787
        %v789 = vsel %vm693, %v781, 0.0
        %790 = vadd.xlane.f32.xlu0 %v789
        %v791 = vpop.xlane.xlu0 %790
        %v792 = vsel %vm693, %v783, 0.0
        %793 = vadd.xlane.f32.xlu0 %v792
        %v794 = vpop.xlane.xlu0 %793
        %v795 = vsel %vm693, %v785, 0.0
        %796 = vadd.xlane.f32.xlu0 %v795
        %v797 = vpop.xlane.xlu0 %796
        %v798 = vrcp.pop %v788
        %v799 = vrcp.pop %v791
        %v800 = vrcp.pop %v794
        %v801 = vrcp.pop %v797
        %v802 = vmul.f32 %v779, %v798
        %v803 = vmul.f32 %v781, %v799
        %v804 = vmul.f32 %v783, %v800
        %v805 = vmul.f32 %v785, %v801
        %806 = vrot.lane.b32.xlu0 %v676, 64
        %v807 = vpop.permute.xlu0 %806
        %808 = vrot.lane.b32.xlu0 %v679, 64
        %v809 = vpop.permute.xlu0 %808
        %v813 = vsel %vm693, %v802, 0
        %v816 = vsel %vm693, %v803, 0
        %818 = vmatpush.msra.mxu0 0.0
        %819 = vmatpush.msra.mxu0 0.0
        %820 = vmatpush.msra.mxu0 0.0
        %821 = vmatpush.msra.mxu0 0.0
        %822 = vmatpush.msra.mxu0 0.0
        %823 = vmatpush.msra.mxu0 0.0
        %824 = vmatpush.msra.mxu0 0.0
        %825 = vmatpush.msra.mxu0 0.0
        %826 = vmatpush.msra.mxu0 0.0
        %827 = vmatpush.msra.mxu0 0.0
        %828 = vmatpush.msra.mxu0 0.0
        %829 = vmatpush.msra.mxu0 0.0
        %830 = vmatpush.msra.mxu0 0.0
        %831 = vmatpush.msra.mxu0 0.0
        %832 = vmatpush.msra.mxu0 %v809
        %833 = vmatpush.msra.mxu0 %v807
        %834 = vmatmul.f32.gmra.mxu0 %v813
        %v835 = vpop.f32.mrf.mxu0
        %v836 = vadd.f32 0.0, %v835
        %837 = vmatmul.f32.gmra.mxu0 %v816
        %v838 = vpop.f32.mrf.mxu0
        %v839 = vadd.f32 0.0, %v838
        %840 = vdwg.mxu0
        %841 = vrot.lane.b32.xlu0 %v682, 64
        %v842 = vpop.permute.xlu0 %841
        %843 = vrot.lane.b32.xlu0 %v685, 64
        %v844 = vpop.permute.xlu0 %843
        %v848 = vsel %vm693, %v804, 0
        %v851 = vsel %vm693, %v805, 0
        %853 = vmatpush.msra.mxu0 0.0
        %854 = vmatpush.msra.mxu0 0.0
        %855 = vmatpush.msra.mxu0 0.0
        %856 = vmatpush.msra.mxu0 0.0
        %857 = vmatpush.msra.mxu0 0.0
        %858 = vmatpush.msra.mxu0 0.0
        %859 = vmatpush.msra.mxu0 0.0
        %860 = vmatpush.msra.mxu0 0.0
        %861 = vmatpush.msra.mxu0 0.0
        %862 = vmatpush.msra.mxu0 0.0
        %863 = vmatpush.msra.mxu0 0.0
        %864 = vmatpush.msra.mxu0 0.0
        %865 = vmatpush.msra.mxu0 0.0
        %866 = vmatpush.msra.mxu0 0.0
        %867 = vmatpush.msra.mxu0 %v844
        %868 = vmatpush.msra.mxu0 %v842
        %869 = vmatmul.f32.gmra.mxu0 %v848
        %v870 = vpop.f32.mrf.mxu0
        %v871 = vadd.f32 0.0, %v870
        %872 = vmatmul.f32.gmra.mxu0 %v851
        %v873 = vpop.f32.mrf.mxu0
        %v874 = vadd.f32 0.0, %v873
        %875 = vdwg.mxu0
        %876 = vrot.lane.b32.xlu0 %v676, 112
        %v877 = vpop.permute.xlu0 %876
        %878 = vrot.lane.b32.xlu0 %v679, 112
        %v879 = vpop.permute.xlu0 %878
        %880 = vrot.lane.b32.xlu0 %v676, 80
        %v881 = vpop.permute.xlu0 %880
        %882 = vrot.lane.b32.xlu0 %v679, 80
        %v883 = vpop.permute.xlu0 %882
        %v884 = vsel %vm693, %v877, 0
        %v886 = vsel %vm693, %v879, 0
        %v888 = vsel %vm693, %v881, 0
        %v890 = vsel %vm693, %v883, 0
        %892 = vmatpush.xpose.msra.mxu0 0.0
        %893 = vmatpush.xpose.msra.mxu0 0.0
        %894 = vmatpush.xpose.msra.mxu0 0.0
        %895 = vmatpush.xpose.msra.mxu0 0.0
        %896 = vmatpush.xpose.msra.mxu0 0.0
        %897 = vmatpush.xpose.msra.mxu0 0.0
        %898 = vmatpush.xpose.msra.mxu0 0.0
        %899 = vmatpush.xpose.msra.mxu0 0.0
        %900 = vmatpush.xpose.msra.mxu0 0.0
        %901 = vmatpush.xpose.msra.mxu0 0.0
        %902 = vmatpush.xpose.msra.mxu0 0.0
        %903 = vmatpush.xpose.msra.mxu0 0.0
        %904 = vmatpush.xpose.msra.mxu0 0.0
        %905 = vmatpush.xpose.msra.mxu0 0.0
        %906 = vmatpush.xpose.msra.mxu0 %v890
        %907 = vmatpush.xpose.msra.mxu0 %v888
        %908 = vmatmul.f32.gmra.mxu0 %v884
        %v909 = vpop.f32.mrf.mxu0
        %v910 = vadd.f32 0.0, %v909
        %911 = vmatmul.f32.gmra.mxu0 %v886
        %v912 = vpop.f32.mrf.mxu0
        %v913 = vadd.f32 0.0, %v912
        %914 = vdwg.mxu0
        %915 = vrot.lane.b32.xlu0 %v682, 112
        %v916 = vpop.permute.xlu0 %915
        %917 = vrot.lane.b32.xlu0 %v685, 112
        %v918 = vpop.permute.xlu0 %917
        %919 = vrot.lane.b32.xlu0 %v682, 80
        %v920 = vpop.permute.xlu0 %919
        %921 = vrot.lane.b32.xlu0 %v685, 80
        %v922 = vpop.permute.xlu0 %921
        %v923 = vsel %vm693, %v916, 0
        %v925 = vsel %vm693, %v918, 0
        %v927 = vsel %vm693, %v920, 0
        %v929 = vsel %vm693, %v922, 0
        %931 = vmatpush.xpose.msra.mxu0 0.0
        %932 = vmatpush.xpose.msra.mxu0 0.0
        %933 = vmatpush.xpose.msra.mxu0 0.0
        %934 = vmatpush.xpose.msra.mxu0 0.0
        %935 = vmatpush.xpose.msra.mxu0 0.0
        %936 = vmatpush.xpose.msra.mxu0 0.0
        %937 = vmatpush.xpose.msra.mxu0 0.0
        %938 = vmatpush.xpose.msra.mxu0 0.0
        %939 = vmatpush.xpose.msra.mxu0 0.0
        %940 = vmatpush.xpose.msra.mxu0 0.0
        %941 = vmatpush.xpose.msra.mxu0 0.0
        %942 = vmatpush.xpose.msra.mxu0 0.0
        %943 = vmatpush.xpose.msra.mxu0 0.0
        %944 = vmatpush.xpose.msra.mxu0 0.0
        %945 = vmatpush.xpose.msra.mxu0 %v929
        %946 = vmatpush.xpose.msra.mxu0 %v927
        %947 = vmatmul.f32.gmra.mxu0 %v923
        %v948 = vpop.f32.mrf.mxu0
        %v949 = vadd.f32 0.0, %v948
        %950 = vmatmul.f32.gmra.mxu0 %v925
        %v951 = vpop.f32.mrf.mxu0
        %v952 = vadd.f32 0.0, %v951
        %953 = vdwg.mxu0
        %v954 = vsel %vm693, %v910, -inf
        %955 = vmax.xlane.f32.xlu0 %v954
        %v956 = vpop.xlane.xlu0 %955
        %v957 = vsel %vm693, %v913, -inf
        %958 = vmax.xlane.f32.xlu0 %v957
        %v959 = vpop.xlane.xlu0 %958
        %v960 = vsel %vm693, %v949, -inf
        %961 = vmax.xlane.f32.xlu0 %v960
        %v962 = vpop.xlane.xlu0 %961
        %v963 = vsel %vm693, %v952, -inf
        %964 = vmax.xlane.f32.xlu0 %v963
        %v965 = vpop.xlane.xlu0 %964
        %v966 = vsub.f32 %v910, %v956
        %v967 = vsub.f32 %v913, %v959
        %v968 = vsub.f32 %v949, %v962
        %v969 = vsub.f32 %v952, %v965
        %v970 = vmul.f32 %v966, 1.442695
        %v971 = vpow.pop %v970
        %v972 = vmul.f32 %v967, 1.442695
        %v973 = vpow.pop %v972
        %v974 = vmul.f32 %v968, 1.442695
        %v975 = vpow.pop %v974
        %v976 = vmul.f32 %v969, 1.442695
        %v977 = vpow.pop %v976
        %v978 = vsel %vm693, %v971, 0.0
        %979 = vadd.xlane.f32.xlu0 %v978
        %v980 = vpop.xlane.xlu0 %979
        %v981 = vsel %vm693, %v973, 0.0
        %982 = vadd.xlane.f32.xlu0 %v981
        %v983 = vpop.xlane.xlu0 %982
        %v984 = vsel %vm693, %v975, 0.0
        %985 = vadd.xlane.f32.xlu0 %v984
        %v986 = vpop.xlane.xlu0 %985
        %v987 = vsel %vm693, %v977, 0.0
        %988 = vadd.xlane.f32.xlu0 %v987
        %v989 = vpop.xlane.xlu0 %988
        %v990 = vrcp.pop %v980
        %v991 = vrcp.pop %v983
        %v992 = vrcp.pop %v986
        %v993 = vrcp.pop %v989
        %v994 = vmul.f32 %v971, %v990
        %v995 = vmul.f32 %v973, %v991
        %v996 = vmul.f32 %v975, %v992
        %v997 = vmul.f32 %v977, %v993
        %998 = vrot.lane.b32.xlu0 %v676, 48
        %v999 = vpop.permute.xlu0 %998
        %1000 = vrot.lane.b32.xlu0 %v679, 48
        %v1001 = vpop.permute.xlu0 %1000
        %v1005 = vsel %vm693, %v994, 0
        %v1008 = vsel %vm693, %v995, 0
        %1010 = vmatpush.msra.mxu0 0.0
        %1011 = vmatpush.msra.mxu0 0.0
        %1012 = vmatpush.msra.mxu0 0.0
        %1013 = vmatpush.msra.mxu0 0.0
        %1014 = vmatpush.msra.mxu0 0.0
        %1015 = vmatpush.msra.mxu0 0.0
        %1016 = vmatpush.msra.mxu0 0.0
        %1017 = vmatpush.msra.mxu0 0.0
        %1018 = vmatpush.msra.mxu0 0.0
        %1019 = vmatpush.msra.mxu0 0.0
        %1020 = vmatpush.msra.mxu0 0.0
        %1021 = vmatpush.msra.mxu0 0.0
        %1022 = vmatpush.msra.mxu0 0.0
        %1023 = vmatpush.msra.mxu0 0.0
        %1024 = vmatpush.msra.mxu0 %v1001
        %1025 = vmatpush.msra.mxu0 %v999
        %1026 = vmatmul.f32.gmra.mxu0 %v1005
        %v1027 = vpop.f32.mrf.mxu0
        %v1028 = vadd.f32 0.0, %v1027
        %1029 = vmatmul.f32.gmra.mxu0 %v1008
        %v1030 = vpop.f32.mrf.mxu0
        %v1031 = vadd.f32 0.0, %v1030
        %1032 = vdwg.mxu0
        %1033 = vrot.lane.b32.xlu0 %v682, 48
        %v1034 = vpop.permute.xlu0 %1033
        %1035 = vrot.lane.b32.xlu0 %v685, 48
        %v1036 = vpop.permute.xlu0 %1035
        %v1040 = vsel %vm693, %v996, 0
        %v1043 = vsel %vm693, %v997, 0
        %1045 = vmatpush.msra.mxu0 0.0
        %1046 = vmatpush.msra.mxu0 0.0
        %1047 = vmatpush.msra.mxu0 0.0
        %1048 = vmatpush.msra.mxu0 0.0
        %1049 = vmatpush.msra.mxu0 0.0
        %1050 = vmatpush.msra.mxu0 0.0
        %1051 = vmatpush.msra.mxu0 0.0
        %1052 = vmatpush.msra.mxu0 0.0
        %1053 = vmatpush.msra.mxu0 0.0
        %1054 = vmatpush.msra.mxu0 0.0
        %1055 = vmatpush.msra.mxu0 0.0
        %1056 = vmatpush.msra.mxu0 0.0
        %1057 = vmatpush.msra.mxu0 0.0
        %1058 = vmatpush.msra.mxu0 0.0
        %1059 = vmatpush.msra.mxu0 %v1036
        %1060 = vmatpush.msra.mxu0 %v1034
        %1061 = vmatmul.f32.gmra.mxu0 %v1040
        %v1062 = vpop.f32.mrf.mxu0
        %v1063 = vadd.f32 0.0, %v1062
        %1064 = vmatmul.f32.gmra.mxu0 %v1043
        %v1065 = vpop.f32.mrf.mxu0
        %v1066 = vadd.f32 0.0, %v1065
        %1067 = vdwg.mxu0
        %1072 = vrot.lane.b32.xlu0 %v1028, 16
        %v1073 = vpop.permute.xlu0 %1072
        %1074 = vrot.lane.b32.xlu0 %v1031, 16
        %v1075 = vpop.permute.xlu0 %1074
        %1076 = vrot.lane.b32.xlu0 %v1063, 16
        %v1077 = vpop.permute.xlu0 %1076
        %1078 = vrot.lane.b32.xlu0 %v1066, 16
        %v1079 = vpop.permute.xlu0 %1078
        %v1084 = vsel %vm693, %v836, %v1073
        %v1085 = vsel %vm693, %v839, %v1075
        %v1086 = vsel %vm693, %v871, %v1077
        %v1087 = vsel %vm693, %v874, %v1079
        %v1088 = vld [vmem:[%s454] sm:$0xff]
        %v1089 = vld [vmem:[%s454 + $0x8] sm:$0xff]
        %v1090 = vld [vmem:[%s454 + $0x10] sm:$0xff]
        %v1091 = vld [vmem:[%s454 + $0x18] sm:$0xff]
        %v1092 = vperm.slane %v534, 2
        %v1094 = vsel %vm535, %v1084, 0
        %v1097 = vsel %vm535, %v1085, 0
        %v1100 = vsel %vm535, %v1086, 0
        %v1103 = vsel %vm535, %v1087, 0
        %1105 = vmatpush.msra.mxu0 0.0
        %1106 = vmatpush.msra.mxu0 0.0
        %1107 = vmatpush.msra.mxu0 0.0
        %1108 = vmatpush.msra.mxu0 0.0
        %1109 = vmatpush.msra.mxu0 0.0
        %1110 = vmatpush.msra.mxu0 0.0
        %1111 = vmatpush.msra.mxu0 0.0
        %1112 = vmatpush.msra.mxu0 0.0
        %1113 = vmatpush.msra.mxu0 0.0
        %1114 = vmatpush.msra.mxu0 0.0
        %1115 = vmatpush.msra.mxu0 0.0
        %1116 = vmatpush.msra.mxu0 0.0
        %1117 = vmatpush.msra.mxu0 %v1091
        %1118 = vmatpush.msra.mxu0 %v1090
        %1119 = vmatpush.msra.mxu0 %v1089
        %1120 = vmatpush.msra.mxu0 %v1088
        %1121 = vmatmul.f32.gmra.mxu0 %v1094
        %v1122 = vpop.f32.mrf.mxu0
        %v1123 = vadd.f32 %v1092, %v1122
        %1124 = vmatmul.f32.gmra.mxu0 %v1097
        %v1125 = vpop.f32.mrf.mxu0
        %v1126 = vadd.f32 %v1092, %v1125
        %1127 = vmatmul.f32.gmra.mxu0 %v1100
        %v1128 = vpop.f32.mrf.mxu0
        %v1129 = vadd.f32 %v1092, %v1128
        %1130 = vmatmul.f32.gmra.mxu0 %v1103
        %v1131 = vpop.f32.mrf.mxu0
        %v1132 = vadd.f32 %v1092, %v1131
        %1133 = vdwg.mxu0
        %v1134 = vadd.f32 %v530, %v1123
        %v1135 = vadd.f32 %v531, %v1126
        %v1136 = vadd.f32 %v532, %v1129
        %v1137 = vadd.f32 %v533, %v1132
        %v1138 = vsel %vm535, %v1134, 0.0
        %1139 = vadd.xlane.f32.xlu0 %v1138
        %v1140 = vpop.xlane.xlu0 %1139
        %v1141 = vsel %vm535, %v1135, 0.0
        %1142 = vadd.xlane.f32.xlu0 %v1141
        %v1143 = vpop.xlane.xlu0 %1142
        %v1144 = vsel %vm535, %v1136, 0.0
        %1145 = vadd.xlane.f32.xlu0 %v1144
        %v1146 = vpop.xlane.xlu0 %1145
        %v1147 = vsel %vm535, %v1137, 0.0
        %1148 = vadd.xlane.f32.xlu0 %v1147
        %v1149 = vpop.xlane.xlu0 %1148
        %v1150 = vmul.f32 %v1140, %v554
        %v1151 = vmul.f32 %v1143, %v554
        %v1152 = vmul.f32 %v1146, %v554
        %v1153 = vmul.f32 %v1149, %v554
        %v1154 = vsub.f32 %v1134, %v1150
        %v1155 = vsub.f32 %v1135, %v1151
        %v1156 = vsub.f32 %v1136, %v1152
        %v1157 = vsub.f32 %v1137, %v1153
        %v1158 = vmul.f32 %v1154, %v1154
        %v1159 = vmul.f32 %v1155, %v1155
        %v1160 = vmul.f32 %v1156, %v1156
        %v1161 = vmul.f32 %v1157, %v1157
        %v1162 = vsel %vm535, %v1158, 0.0
        %1163 = vadd.xlane.f32.xlu0 %v1162
        %v1164 = vpop.xlane.xlu0 %1163
        %v1165 = vsel %vm535, %v1159, 0.0
        %1166 = vadd.xlane.f32.xlu0 %v1165
        %v1167 = vpop.xlane.xlu0 %1166
        %v1168 = vsel %vm535, %v1160, 0.0
        %1169 = vadd.xlane.f32.xlu0 %v1168
        %v1170 = vpop.xlane.xlu0 %1169
        %v1171 = vsel %vm535, %v1161, 0.0
        %1172 = vadd.xlane.f32.xlu0 %v1171
        %v1173 = vpop.xlane.xlu0 %1172
        %v1174 = vmul.f32 %v1164, %v554
        %v1175 = vmul.f32 %v1167, %v554
        %v1176 = vmul.f32 %v1170, %v554
        %v1177 = vmul.f32 %v1173, %v554
        %v1178 = vadd.f32 %v1174, 1e-05
        %v1179 = vadd.f32 %v1175, 1e-05
        %v1180 = vadd.f32 %v1176, 1e-05
        %v1181 = vadd.f32 %v1177, 1e-05
        %v1182 = vrsqrt.pop %v1178
        %v1183 = vmul.f32 %v1182, %v1178
        %v1184 = vmul.f32 %v1183, %v1182
        %v1185 = vmul.f32 0.5, %v1184
        %v1186 = vsub.f32 1.5, %v1185
        %v1187 = vmul.f32 %v1182, %v1186
        %vm1188 = vweird.f32 %v1178
        %vm1189 = vweird.f32 %v1182
        %vm1190 = vmor %vm1188, %vm1189
        %v1191 = vsel %vm1190, %v1182, %v1187
        %v1192 = vrsqrt.pop %v1179
        %v1193 = vmul.f32 %v1192, %v1179
        %v1194 = vmul.f32 %v1193, %v1192
        %v1195 = vmul.f32 0.5, %v1194
        %v1196 = vsub.f32 1.5, %v1195
        %v1197 = vmul.f32 %v1192, %v1196
        %vm1198 = vweird.f32 %v1179
        %vm1199 = vweird.f32 %v1192
        %vm1200 = vmor %vm1198, %vm1199
        %v1201 = vsel %vm1200, %v1192, %v1197
        %v1202 = vrsqrt.pop %v1180
        %v1203 = vmul.f32 %v1202, %v1180
        %v1204 = vmul.f32 %v1203, %v1202
        %v1205 = vmul.f32 0.5, %v1204
        %v1206 = vsub.f32 1.5, %v1205
        %v1207 = vmul.f32 %v1202, %v1206
        %vm1208 = vweird.f32 %v1180
        %vm1209 = vweird.f32 %v1202
        %vm1210 = vmor %vm1208, %vm1209
        %v1211 = vsel %vm1210, %v1202, %v1207
        %v1212 = vrsqrt.pop %v1181
        %v1213 = vmul.f32 %v1212, %v1181
        %v1214 = vmul.f32 %v1213, %v1212
        %v1215 = vmul.f32 0.5, %v1214
        %v1216 = vsub.f32 1.5, %v1215
        %v1217 = vmul.f32 %v1212, %v1216
        %vm1218 = vweird.f32 %v1181
        %vm1219 = vweird.f32 %v1212
        %vm1220 = vmor %vm1218, %vm1219
        %v1221 = vsel %vm1220, %v1212, %v1217
        %v1222 = vmul.f32 %v1154, %v1191
        %v1223 = vmul.f32 %v1155, %v1201
        %v1224 = vmul.f32 %v1156, %v1211
        %v1225 = vmul.f32 %v1157, %v1221
        %v1226 = vperm.slane %v534, 3
        %v1227 = vmul.f32 %v1222, %v1226
        %v1228 = vmul.f32 %v1223, %v1226
        %v1229 = vmul.f32 %v1224, %v1226
        %v1230 = vmul.f32 %v1225, %v1226
        %v1231 = vperm.slane %v534, 4
        %v1232 = vadd.f32 %v1227, %v1231
        %v1233 = vadd.f32 %v1228, %v1231
        %v1234 = vadd.f32 %v1229, %v1231
        %v1235 = vadd.f32 %v1230, %v1231
        %v1236 = vld [vmem:[%s459] sm:$0xff]
        %v1237 = vld [vmem:[%s459 + $0x8] sm:$0xff]
        %v1238 = vld [vmem:[%s459 + $0x10] sm:$0xff]
        %v1239 = vld [vmem:[%s459 + $0x18] sm:$0xff]
        %v1240 = vperm.slane %v534, 7
        %v1242 = vsel %vm535, %v1232, 0
        %v1245 = vsel %vm535, %v1233, 0
        %v1248 = vsel %vm535, %v1234, 0
        %v1251 = vsel %vm535, %v1235, 0
        %1253 = vmatpush.msra.mxu0 0.0
        %1254 = vmatpush.msra.mxu0 0.0
        %1255 = vmatpush.msra.mxu0 0.0
        %1256 = vmatpush.msra.mxu0 0.0
        %1257 = vmatpush.msra.mxu0 0.0
        %1258 = vmatpush.msra.mxu0 0.0
        %1259 = vmatpush.msra.mxu0 0.0
        %1260 = vmatpush.msra.mxu0 0.0
        %1261 = vmatpush.msra.mxu0 0.0
        %1262 = vmatpush.msra.mxu0 0.0
        %1263 = vmatpush.msra.mxu0 0.0
        %1264 = vmatpush.msra.mxu0 0.0
        %1265 = vmatpush.msra.mxu0 %v1239
        %1266 = vmatpush.msra.mxu0 %v1238
        %1267 = vmatpush.msra.mxu0 %v1237
        %1268 = vmatpush.msra.mxu0 %v1236
        %1269 = vmatmul.f32.gmra.mxu0 %v1242
        %v1270 = vpop.f32.mrf.mxu0
        %v1271 = vadd.f32 %v1240, %v1270
        %1272 = vmatmul.f32.gmra.mxu0 %v1245
        %v1273 = vpop.f32.mrf.mxu0
        %v1274 = vadd.f32 %v1240, %v1273
        %1275 = vmatmul.f32.gmra.mxu0 %v1248
        %v1276 = vpop.f32.mrf.mxu0
        %v1277 = vadd.f32 %v1240, %v1276
        %1278 = vmatmul.f32.gmra.mxu0 %v1251
        %v1279 = vpop.f32.mrf.mxu0
        %v1280 = vadd.f32 %v1240, %v1279
        %1281 = vdwg.mxu0
        %v1282 = vmax.f32 %v1271, 0.0
        %v1283 = vmax.f32 %v1274, 0.0
        %v1284 = vmax.f32 %v1277, 0.0
        %v1285 = vmax.f32 %v1280, 0.0
        %v1286 = vld [vmem:[%s464] sm:$0xff]
        %v1287 = vld [vmem:[%s464 + $0x8] sm:$0xff]
        %v1288 = vld [vmem:[%s464 + $0x10] sm:$0xff]
        %v1289 = vld [vmem:[%s464 + $0x18] sm:$0xff]
        %v1290 = vld [vmem:[%s464 + $0x20] sm:$0xff]
        %v1291 = vld [vmem:[%s464 + $0x28] sm:$0xff]
        %v1292 = vld [vmem:[%s464 + $0x30] sm:$0xff]
        %v1293 = vld [vmem:[%s464 + $0x38] sm:$0xff]
        %v1294 = vld [vmem:[%s464 + $0x40] sm:$0xff]
        %v1295 = vld [vmem:[%s464 + $0x48] sm:$0xff]
        %v1296 = vld [vmem:[%s464 + $0x50] sm:$0xff]
        %v1297 = vld [vmem:[%s464 + $0x58] sm:$0xff]
        %v1298 = vld [vmem:[%s464 + $0x60] sm:$0xff]
        %v1299 = vld [vmem:[%s464 + $0x68] sm:$0xff]
        %v1300 = vld [vmem:[%s464 + $0x70] sm:$0xff]
        %v1301 = vld [vmem:[%s464 + $0x78] sm:$0xff]
        %v1302 = vperm.slane %v534, 5
        %1303 = vmatpush.msra.mxu0 %v1301
        %1304 = vmatpush.msra.mxu0 %v1300
        %1305 = vmatpush.msra.mxu0 %v1299
        %1306 = vmatpush.msra.mxu0 %v1298
        %1307 = vmatpush.msra.mxu0 %v1297
        %1308 = vmatpush.msra.mxu0 %v1296
        %1309 = vmatpush.msra.mxu0 %v1295
        %1310 = vmatpush.msra.mxu0 %v1294
        %1311 = vmatpush.msra.mxu0 %v1293
        %1312 = vmatpush.msra.mxu0 %v1292
        %1313 = vmatpush.msra.mxu0 %v1291
        %1314 = vmatpush.msra.mxu0 %v1290
        %1315 = vmatpush.msra.mxu0 %v1289
        %1316 = vmatpush.msra.mxu0 %v1288
        %1317 = vmatpush.msra.mxu0 %v1287
        %1318 = vmatpush.msra.mxu0 %v1286
        %1319 = vmatmul.f32.gmra.mxu0 %v1282
        %v1320 = vpop.f32.mrf.mxu0
        %v1321 = vadd.f32 %v1302, %v1320
        %1322 = vmatmul.f32.gmra.mxu0 %v1283
        %v1323 = vpop.f32.mrf.mxu0
        %v1324 = vadd.f32 %v1302, %v1323
        %1325 = vmatmul.f32.gmra.mxu0 %v1284
        %v1326 = vpop.f32.mrf.mxu0
        %v1327 = vadd.f32 %v1302, %v1326
        %1328 = vmatmul.f32.gmra.mxu0 %v1285
        %v1329 = vpop.f32.mrf.mxu0
        %v1330 = vadd.f32 %v1302, %v1329
        %1331 = vdwg.mxu0
        %v1332 = vadd.f32 %v1134, %v1321
        %v1333 = vadd.f32 %v1135, %v1324
        %v1334 = vadd.f32 %v1136, %v1327
        %v1335 = vadd.f32 %v1137, %v1330
        %1336 = vst.msk [vmem:[#allocation2] sm:$0xff] %vm535, %v1332
        %1337 = vst.msk [vmem:[#allocation2 + $0x8] sm:$0xff] %vm535, %v1333
        %1338 = vst.msk [vmem:[#allocation2 + $0x10] sm:$0xff] %vm535, %v1334
        %1339 = vst.msk [vmem:[#allocation2 + $0x18] sm:$0xff] %vm535, %v1335
        %p1340 = scmp.eq.s32.totalorder %s27, 1
        // Predicated region
        $region65: #{transformer_mel_forward.1} parent=59 // pred_check
          %p1341 = pneg %p1340
        $region66: #{transformer_mel_forward.1} parent=59 // pred_check_branch
          %1343 = sbr.rel (%p1341) target = $region68
        $region67: #{transformer_mel_forward.1} parent=59 // pred_region
          %v1344 = vld [vmem:[%s8] sm:$0xff]
          %v1345 = vld [vmem:[%s8 + $0x8] sm:$0xff]
          %v1346 = vld [vmem:[%s8 + $0x10] sm:$0xff]
          %v1347 = vld [vmem:[%s8 + $0x18] sm:$0xff]
          %v1348 = vld [vmem:[%s9] sm:$0x1]
          %v1350 = vperm.slane %v1348, 0
          %v1353 = vsel %vm535, %v1332, 0
          %v1356 = vsel %vm535, %v1333, 0
          %v1359 = vsel %vm535, %v1334, 0
          %v1362 = vsel %vm535, %v1335, 0
          %1364 = vmatpush.msra.mxu0 0.0
          %1365 = vmatpush.msra.mxu0 0.0
          %1366 = vmatpush.msra.mxu0 0.0
          %1367 = vmatpush.msra.mxu0 0.0
          %1368 = vmatpush.msra.mxu0 0.0
          %1369 = vmatpush.msra.mxu0 0.0
          %1370 = vmatpush.msra.mxu0 0.0
          %1371 = vmatpush.msra.mxu0 0.0
          %1372 = vmatpush.msra.mxu0 0.0
          %1373 = vmatpush.msra.mxu0 0.0
          %1374 = vmatpush.msra.mxu0 0.0
          %1375 = vmatpush.msra.mxu0 0.0
          %1376 = vmatpush.msra.mxu0 %v1347
          %1377 = vmatpush.msra.mxu0 %v1346
          %1378 = vmatpush.msra.mxu0 %v1345
          %1379 = vmatpush.msra.mxu0 %v1344
          %1380 = vmatmul.f32.gmra.mxu0 %v1353
          %v1381 = vpop.f32.mrf.mxu0
          %v1382 = vadd.f32 %v1350, %v1381
          %1383 = vmatmul.f32.gmra.mxu0 %v1356
          %v1384 = vpop.f32.mrf.mxu0
          %v1385 = vadd.f32 %v1350, %v1384
          %1386 = vmatmul.f32.gmra.mxu0 %v1359
          %v1387 = vpop.f32.mrf.mxu0
          %v1388 = vadd.f32 %v1350, %v1387
          %1389 = vmatmul.f32.gmra.mxu0 %v1362
          %v1390 = vpop.f32.mrf.mxu0
          %v1391 = vadd.f32 %v1350, %v1390
          %1392 = vdwg.mxu0
          %v1393 = vmax.f32 %v1382, 0.0
          %v1394 = vmax.f32 %v1385, 0.0
          %v1395 = vmax.f32 %v1388, 0.0
          %v1396 = vmax.f32 %v1391, 0.0
          %1397 = vst [vmem:[#allocation3] sm:$0xff] %v1393
          %1398 = vst [vmem:[#allocation3 + $0x8] sm:$0xff] %v1394
          %1399 = vst [vmem:[#allocation3 + $0x10] sm:$0xff] %v1395
          %1400 = vst [vmem:[#allocation3 + $0x18] sm:$0xff] %v1396
        $region68: #{transformer_mel_forward.1} parent=59 // pred_fallthru
          _
        // Predicated region
        $region69: #{transformer_mel_forward.1} parent=59 // pred_check
          %p1401 = pneg %p292
        $region70: #{transformer_mel_forward.1} parent=59 // pred_check_branch
          %1403 = sbr.rel (%p1401) target = $region72
        $region71: #{transformer_mel_forward.1} parent=59 // pred_region
          %s1404 = smul.u32 2, %s26
          %1406 = vsyncadd [#allocation4], 0
          %s1407 = smul.addr %s1404, 2
          %s1408 = smul.addr %s1407, 8
          %s1409 = scalar_lea.hbm %s10, %s1408
          %s1410 = sshll.u32 [#allocation3], 4
          %s1411 = int_to_ptr.vmem [resolvable:$true] %s1410
          %s1412 = sshll.u32 %s1409, 4
          %s1413 = int_to_ptr.hbm [resolvable:$true] %s1412
          %1418 = dma.vmem_to_hbm [thread:$0]  %s1411, 512, %s1413, [#allocation4], 128, 128, 8
        $region72: #{transformer_mel_forward.1} parent=59 // pred_fallthru
          _
        // Predicated region
        $region73: #{transformer_mel_forward.1} parent=59 // pred_check
          %p1419 = pneg %p292
        $region74: #{transformer_mel_forward.1} parent=59 // pred_check_branch
          %1421 = sbr.rel (%p1419) target = $region76
        $region75: #{transformer_mel_forward.1} parent=59 // pred_region
          %1423 = dma.done [#allocation4], 512
        $region76: #{transformer_mel_forward.1} parent=59 // pred_fallthru
          _
      $region60: #{transformer_mel_forward.1} parent=5 // pred_fallthru
        _
      %p1424 = scmp.le.s32.totalorder 2, %s17
      // Predicated region
      $region77: #{transformer_mel_forward.1} parent=5 // pred_check
        %p1425 = pneg %p1424
      $region78: #{transformer_mel_forward.1} parent=5 // pred_check_branch
        %1427 = sbr.rel (%p1425) target = $region80
      $region79: #{transformer_mel_forward.1} parent=5 // pred_region
        %s1428 = ssub.s32 %s17, 2
      $region80: #{transformer_mel_forward.1} parent=5 // pred_fallthru
        _
    $region6: #{transformer_mel_forward.1} parent=1 // loop_footer
      %s21 = sadd.s32 1, %s17
    $region7: #{transformer_mel_forward.1} parent=1 // loop_footer_branch
      %16 = sbr.rel target = $region3
    $region8: #{transformer_mel_forward.1} parent=1 // loop_exit
      _
    %1429 = vsyncpa [#allocation4], 1
    %s1430 = scalar_lea.sflag [#allocation4], 1
    %1431 = vsyncpa %s1430, 1

</llo_original>
